<compile_context>
chip_gen: v7x
topology: tpu7x:2x2x1
jax: 0.10.0
libtpu: 0.0.40
codegen_flags: <defaults>
</compile_context>

<pallas_src>
import functools

import jax
import jax.numpy as jnp
from jax import lax
from jax.experimental import pallas as pl
from jax.experimental.pallas import tpu as pltpu


# ------------------------------- small helpers -------------------------------

def _round_up(x, m):
    return (x + m - 1) // m * m


def _padded_block_bytes(shape, dtype):
    """Conservative VMEM bytes for a block (lane/sublane padded)."""
    s = list(shape)
    if len(s) >= 1:
        s[-1] = _round_up(s[-1], 128)
    if len(s) >= 2:
        s[-2] = _round_up(s[-2], 8)
    n = 1
    for d in s:
        n *= int(d)
    return n * jnp.dtype(dtype).itemsize


def _vmem_budget_bytes():
    """Per-generation VMEM budget with Mosaic headroom (v5e/v6e ~102 MiB,
    v7x ~51 MiB)."""
    try:
        cap = int(pltpu.get_tpu_info().vmem_capacity_bytes)
    except Exception:
        cap = 64 << 20
    return max(32 << 20, int(cap * 0.8))


# ----------------------------- Pallas kernel ---------------------------------

def _bilstm_chunk_kernel(lens_ref, xf_ref, xb_ref, wih_f_ref, wih_b_ref,
                         whh_f_ref, whh_b_ref, bias_f_ref, bias_b_ref,
                         out_f_ref, out_b_ref,
                         xpf_ref, xpb_ref, hf_ref, cf_ref, hb_ref, cb_ref,
                         *, unroll):
    """One time-chunk of a fused bidirectional LSTM.

    Grid = (batch_chunks, time_chunks).  At grid step (b, i) the forward chain
    consumes time chunk i and the backward chain consumes the mirrored chunk
    ntc-1-i (its x/out blocks are index-mapped accordingly).  (h, c) for both
    directions persist in VMEM scratch across the "arbitrary" time axis.
    Positions with t >= len(row) hold their state and emit zeros (packed-
    sequence semantics for trailing padding).
    """
    Tc, Bc, D = xf_ref.shape
    H = whh_f_ref.shape[0]
    G = 4 * H
    i = pl.program_id(1)
    ntc = pl.num_programs(1)

    @pl.when(i == 0)
    def _init():
        z = jnp.zeros_like(hf_ref)
        hf_ref[...] = z
        cf_ref[...] = z
        hb_ref[...] = z
        cb_ref[...] = z

    # Hoisted per-chunk input projection: one big MXU matmul per direction,
    # bias folded in, stored in compute dtype (bf16 on the default path).
    xf = xf_ref[...].reshape(Tc * Bc, D)
    xb = xb_ref[...].reshape(Tc * Bc, D)
    pf = jnp.dot(xf, wih_f_ref[...], preferred_element_type=jnp.float32)
    pb = jnp.dot(xb, wih_b_ref[...], preferred_element_type=jnp.float32)
    xpf_ref[...] = (pf + bias_f_ref[...]).reshape(Tc, Bc, G).astype(xpf_ref.dtype)
    xpb_ref[...] = (pb + bias_b_ref[...]).reshape(Tc, Bc, G).astype(xpb_ref.dtype)

    whh_f = whh_f_ref[...]                     # (H, 4H)
    whh_b = whh_b_ref[...]
    rdt = whh_f.dtype                          # recurrent matmul / activation dtype
    lens = lens_ref[...]                       # (Bc, 1) int32 lengths
    t0_f = i * Tc                              # global offset of forward chunk
    t0_b = (ntc - 1 - i) * Tc                  # global offset of backward chunk

    # bf16 EUP activations on the bf16 path (no-op casts on the f32 path);
    # cell state c and its update stay f32.
    def act_sig(v):
        return jax.nn.sigmoid(v.astype(rdt)).astype(jnp.float32)

    def act_tanh(v):
        return jnp.tanh(v.astype(rdt)).astype(jnp.float32)

    def cell(xp, h, c, whh):
        gates = (jnp.dot(h.astype(rdt), whh, preferred_element_type=jnp.float32)
                 + xp.astype(jnp.float32))
        ig = act_sig(gates[:, 0 * H:1 * H])
        fg = act_sig(gates[:, 1 * H:2 * H])
        gg = act_tanh(gates[:, 2 * H:3 * H])
        og = act_sig(gates[:, 3 * H:4 * H])
        c_new = fg * c + ig * gg
        h_new = og * act_tanh(c_new)
        return h_new, c_new

    def step(t, carry):
        h_f, c_f, h_b, c_b = carry
        tb = Tc - 1 - t
        v_f = (t0_f + t) < lens                # (Bc, 1) bool: real token?
        v_b = (t0_b + tb) < lens
        hf_c, cf_c = cell(xpf_ref[t], h_f, c_f, whh_f)
        hb_c, cb_c = cell(xpb_ref[tb], h_b, c_b, whh_b)
        # full-width, lane-dense block stores; padded steps emit zeros.
        out_f_ref[t] = jnp.where(v_f, hf_c, 0.0).astype(out_f_ref.dtype)
        out_b_ref[tb] = jnp.where(v_b, hb_c, 0.0).astype(out_b_ref.dtype)
        # select-based gated recurrence: padded steps hold state.
        h_f = jnp.where(v_f, hf_c, h_f)
        c_f = jnp.where(v_f, cf_c, c_f)
        h_b = jnp.where(v_b, hb_c, h_b)
        c_b = jnp.where(v_b, cb_c, c_b)
        return h_f, c_f, h_b, c_b

    carry = (hf_ref[...], cf_ref[...], hb_ref[...], cb_ref[...])
    if unroll >= 2:
        def body2(k, c2):
            return step(2 * k + 1, step(2 * k, c2))
        carry = lax.fori_loop(0, Tc // 2, body2, carry)
        if Tc % 2:
            carry = step(Tc - 1, carry)
    else:
        carry = lax.fori_loop(0, Tc, step, carry)

    hf_ref[...] = carry[0]
    cf_ref[...] = carry[1]
    hb_ref[...] = carry[2]
    cb_ref[...] = carry[3]


def _bilstm_layer(x_tbd, lens_b1, fwd_params, bwd_params, *, compute_dtype,
                  out_dtype, time_chunk, batch_chunk):
    """One bidirectional LSTM layer.  x_tbd: (T, B, D) -> (out_f, out_b),
    each (T, B, H).  T % time_chunk == 0 and B % batch_chunk == 0 required."""
    T, B, D = x_tbd.shape
    w_ih_f, w_hh_f, b_ih_f, b_hh_f = fwd_params
    w_ih_b, w_hh_b, b_ih_b, b_hh_b = bwd_params
    H = w_hh_f.shape[1]                                    # torch w_hh: (4H, H)
    G = 4 * H
    Tc, Bc = time_chunk, batch_chunk
    assert T % Tc == 0 and B % Bc == 0, (T, Tc, B, Bc)
    ntc, nbc = T // Tc, B // Bc

    cd = compute_dtype
    wih_f = w_ih_f.T.astype(cd)                            # (D, 4H)
    wih_b = w_ih_b.T.astype(cd)
    whh_f = w_hh_f.T.astype(cd)                            # (H, 4H)
    whh_b = w_hh_b.T.astype(cd)
    bias_f = (b_ih_f + b_hh_f).reshape(1, G).astype(jnp.float32)
    bias_b = (b_ih_b + b_hh_b).reshape(1, G).astype(jnp.float32)
    x = x_tbd.astype(cd)

    # unroll-by-2 only while the doubled live set plausibly fits 64 vregs.
    unroll = 2 if (Bc // 8) * max(1, _round_up(H, 128) // 128) <= 4 else 1

    budget = _vmem_budget_bytes()
    need = (
        2 * 2 * _padded_block_bytes((Tc, Bc, D), cd)           # fwd/bwd x blocks, 2-buffered
        + 2 * 2 * _padded_block_bytes((Tc, Bc, H), out_dtype)  # two outputs, 2-buffered
        + 2 * (2 * _padded_block_bytes((D, G), cd)             # resident weights
               + 2 * _padded_block_bytes((H, G), cd)
               + _padded_block_bytes((1, G), jnp.float32))
        + 2 * _padded_block_bytes((Bc, 1), jnp.int32)
        + 2 * _padded_block_bytes((Tc, Bc, G), cd)             # x-projection scratch
        + 4 * _padded_block_bytes((Bc, H), jnp.float32)        # carried state
        + (4 << 20)                                            # Mosaic headroom
    )
    if need > budget:
        raise ValueError(
            f"BiLSTM chunk VMEM footprint ~{need >> 20} MiB exceeds budget "
            f"{budget >> 20} MiB; reduce time_chunk/batch_chunk.")

    grid = (nbc, ntc)
    in_specs = [
        pl.BlockSpec((Bc, 1), lambda b, i: (b, 0)),                       # lengths
        pl.BlockSpec((Tc, Bc, D), lambda b, i: (i, b, 0)),                # x, fwd chunk
        pl.BlockSpec((Tc, Bc, D), lambda b, i: (ntc - 1 - i, b, 0)),      # x, bwd chunk
        pl.BlockSpec((D, G), lambda b, i: (0, 0)),                        # wih_f (resident)
        pl.BlockSpec((D, G), lambda b, i: (0, 0)),                        # wih_b
        pl.BlockSpec((H, G), lambda b, i: (0, 0)),                        # whh_f
        pl.BlockSpec((H, G), lambda b, i: (0, 0)),                        # whh_b
        pl.BlockSpec((1, G), lambda b, i: (0, 0)),                        # bias_f
        pl.BlockSpec((1, G), lambda b, i: (0, 0)),                        # bias_b
    ]
    out_specs = [
        pl.BlockSpec((Tc, Bc, H), lambda b, i: (i, b, 0)),                # out_f
        pl.BlockSpec((Tc, Bc, H), lambda b, i: (ntc - 1 - i, b, 0)),      # out_b
    ]

    out_f, out_b = pl.pallas_call(
        functools.partial(_bilstm_chunk_kernel, unroll=unroll),
        grid=grid,
        out_shape=(jax.ShapeDtypeStruct((T, B, H), out_dtype),
                   jax.ShapeDtypeStruct((T, B, H), out_dtype)),
        in_specs=in_specs,
        out_specs=out_specs,
        scratch_shapes=[
            pltpu.VMEM((Tc, Bc, G), cd),          # x-projection, fwd chunk
            pltpu.VMEM((Tc, Bc, G), cd),          # x-projection, bwd chunk
            pltpu.VMEM((Bc, H), jnp.float32),     # h fwd carry
            pltpu.VMEM((Bc, H), jnp.float32),     # c fwd carry
            pltpu.VMEM((Bc, H), jnp.float32),     # h bwd carry
            pltpu.VMEM((Bc, H), jnp.float32),     # c bwd carry
        ],
        compiler_params=pltpu.CompilerParams(
            dimension_semantics=("parallel", "arbitrary"),
            vmem_limit_bytes=int(budget)),
    )(lens_b1, x, x, wih_f, wih_b, whh_f, whh_b, bias_f, bias_b)
    return out_f, out_b


# --------------------------- StackedBRNN forward ----------------------------

def stacked_brnn_forward(x, x_mask, layer_params, *, concat_layers=False,
                         compute_dtype=jnp.bfloat16, time_chunk=64,
                         batch_chunk=64):
    """x: (B, L, D); x_mask: (B, L), 1 = padding, 0 = real token.

    All-zero mask -> identical to PyTorch _forward_unpadded.
    Trailing padding -> matches the packed-sequence _forward_padded result
    (padded positions emit zeros; recurrences skip them).  Only trailing
    padding is supported.  dropout_rate is assumed 0 (eval).
    """
    B, L, D = x.shape
    lens = jnp.sum((x_mask == 0).astype(jnp.int32), axis=1).astype(jnp.int32)

    bc = _round_up(min(batch_chunk, _round_up(B, 8)), 8)
    B_pad = _round_up(B, bc)
    tc = min(time_chunk, L)
    T_pad = _round_up(L, tc)

    h = jnp.transpose(x, (1, 0, 2)).astype(jnp.float32)        # (L, B, D)
    h = jnp.pad(h, ((0, T_pad - L), (0, B_pad - B), (0, 0)))   # padded rows/steps gated off
    lens2 = jnp.pad(lens, (0, B_pad - B)).reshape(B_pad, 1)

    n_layers = len(layer_params)
    outputs = []
    for li, (fwd_p, bwd_p) in enumerate(layer_params):
        keep_f32 = concat_layers or (li == n_layers - 1)
        out_dtype = jnp.float32 if keep_f32 else compute_dtype
        of, ob = _bilstm_layer(h, lens2, fwd_p, bwd_p,
                               compute_dtype=compute_dtype, out_dtype=out_dtype,
                               time_chunk=tc, batch_chunk=bc)
        h = jnp.concatenate([of, ob], axis=-1)                 # (T_pad, B_pad, 2H)
        outputs.append(h)
    out = jnp.concatenate(outputs, axis=2) if concat_layers else outputs[-1]
    out = out[:L, :B, :]
    return jnp.transpose(out, (1, 0, 2)).astype(jnp.float32)   # (B, L, 2H[*layers])


# --------------------------- deterministic params ---------------------------

def init_params(key, input_size, hidden_size, num_layers):
    """PyTorch-style U(-1/sqrt(H), 1/sqrt(H)); per layer: (fwd, bwd) dirs."""
    params = []
    scale = 1.0 / float(hidden_size) ** 0.5
    in_sz = input_size
    for _ in range(num_layers):
        dirs = []
        for _d in range(2):
            key, k1, k2, k3, k4 = jax.random.split(key, 5)
            w_ih = jax.random.uniform(k1, (4 * hidden_size, in_sz), jnp.float32, -scale, scale)
            w_hh = jax.random.uniform(k2, (4 * hidden_size, hidden_size), jnp.float32, -scale, scale)
            b_ih = jax.random.uniform(k3, (4 * hidden_size,), jnp.float32, -scale, scale)
            b_hh = jax.random.uniform(k4, (4 * hidden_size,), jnp.float32, -scale, scale)
            dirs.append((w_ih, w_hh, b_ih, b_hh))
        params.append(tuple(dirs))
        in_sz = 2 * hidden_size
    return params


# ---------------------------- pure-JAX reference ----------------------------

def _ref_lstm_direction(x_tbd, valid_tb1, w_ih, w_hh, b_ih, b_hh):
    H = w_hh.shape[1]
    B = x_tbd.shape[1]

    def step(carry, inp):
        x_t, v_t = inp
        h, c = carry
        gates = x_t @ w_ih.T + h @ w_hh.T + b_ih + b_hh
        i = jax.nn.sigmoid(gates[:, :H])
        f = jax.nn.sigmoid(gates[:, H:2 * H])
        g = jnp.tanh(gates[:, 2 * H:3 * H])
        o = jax.nn.sigmoid(gates[:, 3 * H:])
        c_cand = f * c + i * g
        h_cand = o * jnp.tanh(c_cand)
        h_new = v_t * h_cand + (1.0 - v_t) * h
        c_new = v_t * c_cand + (1.0 - v_t) * c
        return (h_new, c_new), v_t * h_cand

    init = (jnp.zeros((B, H), jnp.float32), jnp.zeros((B, H), jnp.float32))
    _, hs = lax.scan(step, init, (x_tbd, valid_tb1))
    return hs


def ref_forward(x, x_mask, layer_params, *, concat_layers=False):
    B, L, _ = x.shape
    valid = 1.0 - x_mask.astype(jnp.float32)
    h = jnp.transpose(x, (1, 0, 2)).astype(jnp.float32)
    v = jnp.transpose(valid, (1, 0)).reshape(L, B, 1)
    outputs = []
    for fwd_p, bwd_p in layer_params:
        h_f = _ref_lstm_direction(h, v, *fwd_p)
        h_b = _ref_lstm_direction(h[::-1], v[::-1], *bwd_p)[::-1]
        h = jnp.concatenate([h_f, h_b], axis=-1)
        outputs.append(h)
    out = jnp.concatenate(outputs, axis=2) if concat_layers else outputs[-1]
    return jnp.transpose(out, (1, 0, 2))


# ----------------------------------- main ------------------------------------

if __name__ == "__main__":
    B, L, D, H, NUM_LAYERS = 2, 8, 32, 32, 2

    key = jax.random.PRNGKey(0)
    kx, kp = jax.random.split(key)
    x = jax.random.normal(kx, (B, L, D), jnp.float32)
    params = init_params(kp, D, H, NUM_LAYERS)

    # 1) all-real tokens (_forward_unpadded branch), f32 compute, single chunk.
    mask0 = jnp.zeros((B, L), jnp.int32)
    out = jax.block_until_ready(
        stacked_brnn_forward(x, mask0, params, compute_dtype=jnp.float32))
    ref = jax.block_until_ready(ref_forward(x, mask0, params))
    assert out.shape == (B, L, 2 * H), out.shape
    assert jnp.allclose(out, ref, atol=1e-4, rtol=1e-4), \
        float(jnp.max(jnp.abs(out - ref)))

    # 2) trailing padding (packed-sequence semantics) + concat_layers, f32,
    #    time_chunk=3 -> 3 time chunks with one padded tail step, exercising
    #    the chunked recurrence, mirrored bwd index maps, and carried state.
    mask1 = jnp.array([[0] * L, [0] * 5 + [1] * 3], jnp.int32)
    out_p = jax.block_until_ready(
        stacked_brnn_forward(x, mask1, params, concat_layers=True,
                             compute_dtype=jnp.float32, time_chunk=3))
    ref_p = jax.block_until_ready(
        ref_forward(x, mask1, params, concat_layers=True))
    assert out_p.shape == (B, L, 2 * H * NUM_LAYERS), out_p.shape
    assert jnp.allclose(out_p, ref_p, atol=1e-4, rtol=1e-4), \
        float(jnp.max(jnp.abs(out_p - ref_p)))

    # 3) default path: bf16 matmuls / activations / xproj scratch /
    #    intermediate-layer outputs — loose sanity check vs f32 reference.
    out_bf = jax.block_until_ready(stacked_brnn_forward(x, mask0, params))
    assert bool(jnp.all(jnp.isfinite(out_bf)))
    assert float(jnp.max(jnp.abs(out_bf - ref))) < 0.25

    print("KERNEL_OK")
</pallas_src>

<mosaic_0001>
module attributes {stable_mosaic.version = 11 : i64} {
  func.func @_bilstm_chunk_kernel(%arg0: i32, %arg1: i32, %arg2: memref<8x1xi32, #tpu.memory_space<vmem>>, %arg3: memref<8x8x32xf32, #tpu.memory_space<vmem>>, %arg4: memref<8x8x32xf32, #tpu.memory_space<vmem>>, %arg5: memref<32x128xf32, #tpu.memory_space<vmem>>, %arg6: memref<32x128xf32, #tpu.memory_space<vmem>>, %arg7: memref<32x128xf32, #tpu.memory_space<vmem>>, %arg8: memref<32x128xf32, #tpu.memory_space<vmem>>, %arg9: memref<1x128xf32, #tpu.memory_space<vmem>>, %arg10: memref<1x128xf32, #tpu.memory_space<vmem>>, %arg11: memref<8x8x32xf32, #tpu.memory_space<vmem>>, %arg12: memref<8x8x32xf32, #tpu.memory_space<vmem>>, %arg13: memref<8x8x128xf32, #tpu.memory_space<vmem>>, %arg14: memref<8x8x128xf32, #tpu.memory_space<vmem>>, %arg15: memref<8x32xf32, #tpu.memory_space<vmem>>, %arg16: memref<8x32xf32, #tpu.memory_space<vmem>>, %arg17: memref<8x32xf32, #tpu.memory_space<vmem>>, %arg18: memref<8x32xf32, #tpu.memory_space<vmem>>) attributes {dimension_semantics = [#tpu.dimension_semantics<parallel>, #tpu.dimension_semantics<arbitrary>], iteration_bounds = array<i64: 1, 1>, scalar_prefetch = 0 : i64, scratch_operands = 6 : i64, tpu.core_type = #tpu.core_type<tc>, window_params = [{transform_indices = @transform_0, window_bounds = array<i64: 8, 1>}, {transform_indices = @transform_1, window_bounds = array<i64: 8, 8, 32>}, {transform_indices = @transform_2, window_bounds = array<i64: 8, 8, 32>}, {pipeline_mode = #tpu.pipeline_mode<synchronous>, transform_indices = @transform_3, window_bounds = array<i64: 32, 128>}, {pipeline_mode = #tpu.pipeline_mode<synchronous>, transform_indices = @transform_4, window_bounds = array<i64: 32, 128>}, {pipeline_mode = #tpu.pipeline_mode<synchronous>, transform_indices = @transform_5, window_bounds = array<i64: 32, 128>}, {pipeline_mode = #tpu.pipeline_mode<synchronous>, transform_indices = @transform_6, window_bounds = array<i64: 32, 128>}, {pipeline_mode = #tpu.pipeline_mode<synchronous>, transform_indices = @transform_7, window_bounds = array<i64: 1, 128>}, {pipeline_mode = #tpu.pipeline_mode<synchronous>, transform_indices = @transform_8, window_bounds = array<i64: 1, 128>}, {transform_indices = @transform_9, window_bounds = array<i64: 8, 8, 32>}, {transform_indices = @transform_10, window_bounds = array<i64: 8, 8, 32>}]} {
    %c0_i32 = arith.constant 0 : i32
    %0 = arith.cmpi eq, %arg1, %c0_i32 : i32
    %1 = arith.extui %0 : i1 to i32
    %c0_i32_0 = arith.constant 0 : i32
    %2 = arith.cmpi ne, %1, %c0_i32_0 : i32
    scf.if %2 {
      %cst_47 = arith.constant 0.000000e+00 : f32
      %37 = vector.broadcast %cst_47 : f32 to vector<8x32xf32>
      %c0_48 = arith.constant 0 : index
      %c0_49 = arith.constant 0 : index
      %38 = vector.load %arg15[%c0_48, %c0_49] : memref<8x32xf32, #tpu.memory_space<vmem>>, vector<8x32xf32>
      tpu.vector_store %arg15[%c0_48, %c0_49], %37 {strides = array<i32>} : memref<8x32xf32, #tpu.memory_space<vmem>>, vector<8x32xf32>,
      %c0_50 = arith.constant 0 : index
      %c0_51 = arith.constant 0 : index
      %39 = vector.load %arg16[%c0_50, %c0_51] : memref<8x32xf32, #tpu.memory_space<vmem>>, vector<8x32xf32>
      tpu.vector_store %arg16[%c0_50, %c0_51], %37 {strides = array<i32>} : memref<8x32xf32, #tpu.memory_space<vmem>>, vector<8x32xf32>,
      %c0_52 = arith.constant 0 : index
      %c0_53 = arith.constant 0 : index
      %40 = vector.load %arg17[%c0_52, %c0_53] : memref<8x32xf32, #tpu.memory_space<vmem>>, vector<8x32xf32>
      tpu.vector_store %arg17[%c0_52, %c0_53], %37 {strides = array<i32>} : memref<8x32xf32, #tpu.memory_space<vmem>>, vector<8x32xf32>,
      %c0_54 = arith.constant 0 : index
      %c0_55 = arith.constant 0 : index
      %41 = vector.load %arg18[%c0_54, %c0_55] : memref<8x32xf32, #tpu.memory_space<vmem>>, vector<8x32xf32>
      tpu.vector_store %arg18[%c0_54, %c0_55], %37 {strides = array<i32>} : memref<8x32xf32, #tpu.memory_space<vmem>>, vector<8x32xf32>,
    } else {
    }
    %c0 = arith.constant 0 : index
    %c0_1 = arith.constant 0 : index
    %c0_2 = arith.constant 0 : index
    %3 = vector.load %arg3[%c0, %c0_1, %c0_2] : memref<8x8x32xf32, #tpu.memory_space<vmem>>, vector<8x8x32xf32>
    %4 = vector.shape_cast %3 : vector<8x8x32xf32> to vector<64x32xf32>
    %c0_3 = arith.constant 0 : index
    %c0_4 = arith.constant 0 : index
    %c0_5 = arith.constant 0 : index
    %5 = vector.load %arg4[%c0_3, %c0_4, %c0_5] : memref<8x8x32xf32, #tpu.memory_space<vmem>>, vector<8x8x32xf32>
    %6 = vector.shape_cast %5 : vector<8x8x32xf32> to vector<64x32xf32>
    %c0_6 = arith.constant 0 : index
    %c0_7 = arith.constant 0 : index
    %7 = vector.load %arg5[%c0_6, %c0_7] : memref<32x128xf32, #tpu.memory_space<vmem>>, vector<32x128xf32>
    %cst = arith.constant dense<0.000000e+00> : vector<64x128xf32>
    %8 = tpu.matmul %4, %7, %cst {dimension_numbers = #tpu.dot_dimension_numbers<[1], [0], [0], [1], [0, 0, 1, 1], [], []>} : vector<64x32xf32>, vector<32x128xf32>, vector<64x128xf32> -> vector<64x128xf32>
    %c0_8 = arith.constant 0 : index
    %c0_9 = arith.constant 0 : index
    %9 = vector.load %arg6[%c0_8, %c0_9] : memref<32x128xf32, #tpu.memory_space<vmem>>, vector<32x128xf32>
    %cst_10 = arith.constant dense<0.000000e+00> : vector<64x128xf32>
    %10 = tpu.matmul %6, %9, %cst_10 {dimension_numbers = #tpu.dot_dimension_numbers<[1], [0], [0], [1], [0, 0, 1, 1], [], []>} : vector<64x32xf32>, vector<32x128xf32>, vector<64x128xf32> -> vector<64x128xf32>
    %c0_11 = arith.constant 0 : index
    %c0_12 = arith.constant 0 : index
    %11 = vector.load %arg9[%c0_11, %c0_12] : memref<1x128xf32, #tpu.memory_space<vmem>>, vector<1x128xf32>
    %12 = vector.broadcast %11 : vector<1x128xf32> to vector<64x128xf32>
    %13 = arith.addf %8, %12 : vector<64x128xf32>
    %14 = vector.shape_cast %13 : vector<64x128xf32> to vector<8x8x128xf32>
    %c0_13 = arith.constant 0 : index
    %c0_14 = arith.constant 0 : index
    %c0_15 = arith.constant 0 : index
    %15 = vector.load %arg13[%c0_13, %c0_14, %c0_15] : memref<8x8x128xf32, #tpu.memory_space<vmem>>, vector<8x8x128xf32>
    tpu.vector_store %arg13[%c0_13, %c0_14, %c0_15], %14 {strides = array<i32>} : memref<8x8x128xf32, #tpu.memory_space<vmem>>, vector<8x8x128xf32>,
    %c0_16 = arith.constant 0 : index
    %c0_17 = arith.constant 0 : index
    %16 = vector.load %arg10[%c0_16, %c0_17] : memref<1x128xf32, #tpu.memory_space<vmem>>, vector<1x128xf32>
    %17 = vector.broadcast %16 : vector<1x128xf32> to vector<64x128xf32>
    %18 = arith.addf %10, %17 : vector<64x128xf32>
    %19 = vector.shape_cast %18 : vector<64x128xf32> to vector<8x8x128xf32>
    %c0_18 = arith.constant 0 : index
    %c0_19 = arith.constant 0 : index
    %c0_20 = arith.constant 0 : index
    %20 = vector.load %arg14[%c0_18, %c0_19, %c0_20] : memref<8x8x128xf32, #tpu.memory_space<vmem>>, vector<8x8x128xf32>
    tpu.vector_store %arg14[%c0_18, %c0_19, %c0_20], %19 {strides = array<i32>} : memref<8x8x128xf32, #tpu.memory_space<vmem>>, vector<8x8x128xf32>,
    %c0_21 = arith.constant 0 : index
    %c0_22 = arith.constant 0 : index
    %21 = vector.load %arg7[%c0_21, %c0_22] : memref<32x128xf32, #tpu.memory_space<vmem>>, vector<32x128xf32>
    %c0_23 = arith.constant 0 : index
    %c0_24 = arith.constant 0 : index
    %22 = vector.load %arg8[%c0_23, %c0_24] : memref<32x128xf32, #tpu.memory_space<vmem>>, vector<32x128xf32>
    %c0_25 = arith.constant 0 : index
    %c0_26 = arith.constant 0 : index
    %23 = vector.load %arg2[%c0_25, %c0_26] : memref<8x1xi32, #tpu.memory_space<vmem>>, vector<8x1xi32>
    %c8_i32 = arith.constant 8 : i32
    %24 = arith.muli %arg1, %c8_i32 : i32
    %c0_i32_27 = arith.constant 0 : i32
    %25 = arith.subi %c0_i32_27, %arg1 : i32
    %c8_i32_28 = arith.constant 8 : i32
    %26 = arith.muli %25, %c8_i32_28 : i32
    %c0_29 = arith.constant 0 : index
    %c0_30 = arith.constant 0 : index
    %27 = vector.load %arg15[%c0_29, %c0_30] : memref<8x32xf32, #tpu.memory_space<vmem>>, vector<8x32xf32>
    %c0_31 = arith.constant 0 : index
    %c0_32 = arith.constant 0 : index
    %28 = vector.load %arg16[%c0_31, %c0_32] : memref<8x32xf32, #tpu.memory_space<vmem>>, vector<8x32xf32>
    %c0_33 = arith.constant 0 : index
    %c0_34 = arith.constant 0 : index
    %29 = vector.load %arg17[%c0_33, %c0_34] : memref<8x32xf32, #tpu.memory_space<vmem>>, vector<8x32xf32>
    %c0_35 = arith.constant 0 : index
    %c0_36 = arith.constant 0 : index
    %30 = vector.load %arg18[%c0_35, %c0_36] : memref<8x32xf32, #tpu.memory_space<vmem>>, vector<8x32xf32>
    %c0_i32_37 = arith.constant 0 : i32
    %c4_i32 = arith.constant 4 : i32
    %31 = arith.addi %c0_i32_37, %c4_i32 : i32
    %c1_i32 = arith.constant 1 : i32
    %32:4 = scf.for %arg19 = %c0_i32_37 to %31 step %c1_i32 iter_args(%arg20 = %27, %arg21 = %28, %arg22 = %29, %arg23 = %30) -> (vector<8x32xf32>, vector<8x32xf32>, vector<8x32xf32>, vector<8x32xf32>)  : i32 {
      %c2_i32 = arith.constant 2 : i32
      %37 = arith.muli %c2_i32, %arg19 : i32
      %c1_i32_47 = arith.constant 1 : i32
      %38 = arith.addi %37, %c1_i32_47 : i32
      %c2_i32_48 = arith.constant 2 : i32
      %39 = arith.muli %c2_i32_48, %arg19 : i32
      %c7_i32 = arith.constant 7 : i32
      %40 = arith.subi %c7_i32, %39 : i32
      %41 = arith.addi %24, %39 : i32
      %42 = vector.broadcast %41 : i32 to vector<8x1xi32>
      %43 = arith.cmpi slt, %42, %23 : vector<8x1xi32>
      %44 = arith.addi %26, %40 : i32
      %45 = vector.broadcast %44 : i32 to vector<8x1xi32>
      %46 = arith.cmpi slt, %45, %23 : vector<8x1xi32>
      %47 = arith.index_cast %39 : i32 to index
      %c0_49 = arith.constant 0 : index
      %c0_50 = arith.constant 0 : index
      %48 = vector.load %arg13[%47, %c0_49, %c0_50] : memref<8x8x128xf32, #tpu.memory_space<vmem>>, vector<1x8x128xf32>
      %49 = vector.shape_cast %48 : vector<1x8x128xf32> to vector<8x128xf32>
      %cst_51 = arith.constant dense<0.000000e+00> : vector<8x128xf32>
      %50 = tpu.matmul %arg20, %21, %cst_51 {dimension_numbers = #tpu.dot_dimension_numbers<[1], [0], [0], [1], [0, 0, 1, 1], [], []>} : vector<8x32xf32>, vector<32x128xf32>, vector<8x128xf32> -> vector<8x128xf32>
      %51 = arith.addf %50, %49 : vector<8x128xf32>
      %52 = vector.extract_strided_slice %51 {offsets = [0, 0], sizes = [8, 32], strides = [1, 1]} : vector<8x128xf32> to vector<8x32xf32>
      %53 = arith.negf %52 : vector<8x32xf32>
      %54 = math.exp %53 : vector<8x32xf32>
      %cst_52 = arith.constant 1.000000e+00 : f32
      %55 = vector.broadcast %cst_52 : f32 to vector<8x32xf32>
      %56 = arith.addf %55, %54 : vector<8x32xf32>
      %57 = arith.divf %55, %56 : vector<8x32xf32>
      %58 = vector.extract_strided_slice %51 {offsets = [0, 32], sizes = [8, 32], strides = [1, 1]} : vector<8x128xf32> to vector<8x32xf32>
      %59 = arith.negf %58 : vector<8x32xf32>
      %60 = math.exp %59 : vector<8x32xf32>
      %cst_53 = arith.constant 1.000000e+00 : f32
      %61 = vector.broadcast %cst_53 : f32 to vector<8x32xf32>
      %62 = arith.addf %61, %60 : vector<8x32xf32>
      %63 = arith.divf %61, %62 : vector<8x32xf32>
      %64 = vector.extract_strided_slice %51 {offsets = [0, 64], sizes = [8, 32], strides = [1, 1]} : vector<8x128xf32> to vector<8x32xf32>
      %65 = math.tanh %64 : vector<8x32xf32>
      %66 = vector.extract_strided_slice %51 {offsets = [0, 96], sizes = [8, 32], strides = [1, 1]} : vector<8x128xf32> to vector<8x32xf32>
      %67 = arith.negf %66 : vector<8x32xf32>
      %68 = math.exp %67 : vector<8x32xf32>
      %cst_54 = arith.constant 1.000000e+00 : f32
      %69 = vector.broadcast %cst_54 : f32 to vector<8x32xf32>
      %70 = arith.addf %69, %68 : vector<8x32xf32>
      %71 = arith.divf %69, %70 : vector<8x32xf32>
      %72 = arith.mulf %63, %arg21 : vector<8x32xf32>
      %73 = arith.mulf %57, %65 : vector<8x32xf32>
      %74 = arith.addf %72, %73 : vector<8x32xf32>
      %75 = math.tanh %74 : vector<8x32xf32>
      %76 = arith.mulf %71, %75 : vector<8x32xf32>
      %77 = arith.index_cast %40 : i32 to index
      %c0_55 = arith.constant 0 : index
      %c0_56 = arith.constant 0 : index
      %78 = vector.load %arg14[%77, %c0_55, %c0_56] : memref<8x8x128xf32, #tpu.memory_space<vmem>>, vector<1x8x128xf32>
      %79 = vector.shape_cast %78 : vector<1x8x128xf32> to vector<8x128xf32>
      %cst_57 = arith.constant dense<0.000000e+00> : vector<8x128xf32>
      %80 = tpu.matmul %arg22, %22, %cst_57 {dimension_numbers = #tpu.dot_dimension_numbers<[1], [0], [0], [1], [0, 0, 1, 1], [], []>} : vector<8x32xf32>, vector<32x128xf32>, vector<8x128xf32> -> vector<8x128xf32>
      %81 = arith.addf %80, %79 : vector<8x128xf32>
      %82 = vector.extract_strided_slice %81 {offsets = [0, 0], sizes = [8, 32], strides = [1, 1]} : vector<8x128xf32> to vector<8x32xf32>
      %83 = arith.negf %82 : vector<8x32xf32>
      %84 = math.exp %83 : vector<8x32xf32>
      %cst_58 = arith.constant 1.000000e+00 : f32
      %85 = vector.broadcast %cst_58 : f32 to vector<8x32xf32>
      %86 = arith.addf %85, %84 : vector<8x32xf32>
      %87 = arith.divf %85, %86 : vector<8x32xf32>
      %88 = vector.extract_strided_slice %81 {offsets = [0, 32], sizes = [8, 32], strides = [1, 1]} : vector<8x128xf32> to vector<8x32xf32>
      %89 = arith.negf %88 : vector<8x32xf32>
      %90 = math.exp %89 : vector<8x32xf32>
      %cst_59 = arith.constant 1.000000e+00 : f32
      %91 = vector.broadcast %cst_59 : f32 to vector<8x32xf32>
      %92 = arith.addf %91, %90 : vector<8x32xf32>
      %93 = arith.divf %91, %92 : vector<8x32xf32>
      %94 = vector.extract_strided_slice %81 {offsets = [0, 64], sizes = [8, 32], strides = [1, 1]} : vector<8x128xf32> to vector<8x32xf32>
      %95 = math.tanh %94 : vector<8x32xf32>
      %96 = vector.extract_strided_slice %81 {offsets = [0, 96], sizes = [8, 32], strides = [1, 1]} : vector<8x128xf32> to vector<8x32xf32>
      %97 = arith.negf %96 : vector<8x32xf32>
      %98 = math.exp %97 : vector<8x32xf32>
      %cst_60 = arith.constant 1.000000e+00 : f32
      %99 = vector.broadcast %cst_60 : f32 to vector<8x32xf32>
      %100 = arith.addf %99, %98 : vector<8x32xf32>
      %101 = arith.divf %99, %100 : vector<8x32xf32>
      %102 = arith.mulf %93, %arg23 : vector<8x32xf32>
      %103 = arith.mulf %87, %95 : vector<8x32xf32>
      %104 = arith.addf %102, %103 : vector<8x32xf32>
      %105 = math.tanh %104 : vector<8x32xf32>
      %106 = arith.mulf %101, %105 : vector<8x32xf32>
      %cst_61 = arith.constant 0.000000e+00 : f32
      %107 = vector.shape_cast %43 : vector<8x1xi1> to vector<8x1xi1>
      %108 = vector.broadcast %107 : vector<8x1xi1> to vector<8x32xi1>
      %109 = vector.broadcast %cst_61 : f32 to vector<8x32xf32>
      %110 = arith.select %108, %76, %109 : vector<8x32xi1>, vector<8x32xf32>
      %111 = arith.index_cast %39 : i32 to index
      %c0_62 = arith.constant 0 : index
      %c0_63 = arith.constant 0 : index
      %112 = vector.load %arg11[%111, %c0_62, %c0_63] : memref<8x8x32xf32, #tpu.memory_space<vmem>>, vector<1x8x32xf32>
      %113 = vector.shape_cast %112 : vector<1x8x32xf32> to vector<8x32xf32>
      %114 = vector.shape_cast %110 : vector<8x32xf32> to vector<1x8x32xf32>
      tpu.vector_store %arg11[%111, %c0_62, %c0_63], %114 {strides = array<i32>} : memref<8x8x32xf32, #tpu.memory_space<vmem>>, vector<1x8x32xf32>,
      %cst_64 = arith.constant 0.000000e+00 : f32
      %115 = vector.shape_cast %46 : vector<8x1xi1> to vector<8x1xi1>
      %116 = vector.broadcast %115 : vector<8x1xi1> to vector<8x32xi1>
      %117 = vector.broadcast %cst_64 : f32 to vector<8x32xf32>
      %118 = arith.select %116, %106, %117 : vector<8x32xi1>, vector<8x32xf32>
      %119 = arith.index_cast %40 : i32 to index
      %c0_65 = arith.constant 0 : index
      %c0_66 = arith.constant 0 : index
      %120 = vector.load %arg12[%119, %c0_65, %c0_66] : memref<8x8x32xf32, #tpu.memory_space<vmem>>, vector<1x8x32xf32>
      %121 = vector.shape_cast %120 : vector<1x8x32xf32> to vector<8x32xf32>
      %122 = vector.shape_cast %118 : vector<8x32xf32> to vector<1x8x32xf32>
      tpu.vector_store %arg12[%119, %c0_65, %c0_66], %122 {strides = array<i32>} : memref<8x8x32xf32, #tpu.memory_space<vmem>>, vector<1x8x32xf32>,
      %123 = vector.shape_cast %43 : vector<8x1xi1> to vector<8x1xi1>
      %124 = vector.broadcast %123 : vector<8x1xi1> to vector<8x32xi1>
      %125 = arith.select %124, %76, %arg20 : vector<8x32xi1>, vector<8x32xf32>
      %126 = vector.shape_cast %43 : vector<8x1xi1> to vector<8x1xi1>
      %127 = vector.broadcast %126 : vector<8x1xi1> to vector<8x32xi1>
      %128 = arith.select %127, %74, %arg21 : vector<8x32xi1>, vector<8x32xf32>
      %129 = vector.shape_cast %46 : vector<8x1xi1> to vector<8x1xi1>
      %130 = vector.broadcast %129 : vector<8x1xi1> to vector<8x32xi1>
      %131 = arith.select %130, %106, %arg22 : vector<8x32xi1>, vector<8x32xf32>
      %132 = vector.shape_cast %46 : vector<8x1xi1> to vector<8x1xi1>
      %133 = vector.broadcast %132 : vector<8x1xi1> to vector<8x32xi1>
      %134 = arith.select %133, %104, %arg23 : vector<8x32xi1>, vector<8x32xf32>
      %c7_i32_67 = arith.constant 7 : i32
      %135 = arith.subi %c7_i32_67, %38 : i32
      %136 = arith.addi %24, %38 : i32
      %137 = vector.broadcast %136 : i32 to vector<8x1xi32>
      %138 = arith.cmpi slt, %137, %23 : vector<8x1xi32>
      %139 = arith.addi %26, %135 : i32
      %140 = vector.broadcast %139 : i32 to vector<8x1xi32>
      %141 = arith.cmpi slt, %140, %23 : vector<8x1xi32>
      %142 = arith.index_cast %38 : i32 to index
      %c0_68 = arith.constant 0 : index
      %c0_69 = arith.constant 0 : index
      %143 = vector.load %arg13[%142, %c0_68, %c0_69] : memref<8x8x128xf32, #tpu.memory_space<vmem>>, vector<1x8x128xf32>
      %144 = vector.shape_cast %143 : vector<1x8x128xf32> to vector<8x128xf32>
      %cst_70 = arith.constant dense<0.000000e+00> : vector<8x128xf32>
      %145 = tpu.matmul %125, %21, %cst_70 {dimension_numbers = #tpu.dot_dimension_numbers<[1], [0], [0], [1], [0, 0, 1, 1], [], []>} : vector<8x32xf32>, vector<32x128xf32>, vector<8x128xf32> -> vector<8x128xf32>
      %146 = arith.addf %145, %144 : vector<8x128xf32>
      %147 = vector.extract_strided_slice %146 {offsets = [0, 0], sizes = [8, 32], strides = [1, 1]} : vector<8x128xf32> to vector<8x32xf32>
      %148 = arith.negf %147 : vector<8x32xf32>
      %149 = math.exp %148 : vector<8x32xf32>
      %cst_71 = arith.constant 1.000000e+00 : f32
      %150 = vector.broadcast %cst_71 : f32 to vector<8x32xf32>
      %151 = arith.addf %150, %149 : vector<8x32xf32>
      %152 = arith.divf %150, %151 : vector<8x32xf32>
      %153 = vector.extract_strided_slice %146 {offsets = [0, 32], sizes = [8, 32], strides = [1, 1]} : vector<8x128xf32> to vector<8x32xf32>
      %154 = arith.negf %153 : vector<8x32xf32>
      %155 = math.exp %154 : vector<8x32xf32>
      %cst_72 = arith.constant 1.000000e+00 : f32
      %156 = vector.broadcast %cst_72 : f32 to vector<8x32xf32>
      %157 = arith.addf %156, %155 : vector<8x32xf32>
      %158 = arith.divf %156, %157 : vector<8x32xf32>
      %159 = vector.extract_strided_slice %146 {offsets = [0, 64], sizes = [8, 32], strides = [1, 1]} : vector<8x128xf32> to vector<8x32xf32>
      %160 = math.tanh %159 : vector<8x32xf32>
      %161 = vector.extract_strided_slice %146 {offsets = [0, 96], sizes = [8, 32], strides = [1, 1]} : vector<8x128xf32> to vector<8x32xf32>
      %162 = arith.negf %161 : vector<8x32xf32>
      %163 = math.exp %162 : vector<8x32xf32>
      %cst_73 = arith.constant 1.000000e+00 : f32
      %164 = vector.broadcast %cst_73 : f32 to vector<8x32xf32>
      %165 = arith.addf %164, %163 : vector<8x32xf32>
      %166 = arith.divf %164, %165 : vector<8x32xf32>
      %167 = arith.mulf %158, %128 : vector<8x32xf32>
      %168 = arith.mulf %152, %160 : vector<8x32xf32>
      %169 = arith.addf %167, %168 : vector<8x32xf32>
      %170 = math.tanh %169 : vector<8x32xf32>
      %171 = arith.mulf %166, %170 : vector<8x32xf32>
      %172 = arith.index_cast %135 : i32 to index
      %c0_74 = arith.constant 0 : index
      %c0_75 = arith.constant 0 : index
      %173 = vector.load %arg14[%172, %c0_74, %c0_75] : memref<8x8x128xf32, #tpu.memory_space<vmem>>, vector<1x8x128xf32>
      %174 = vector.shape_cast %173 : vector<1x8x128xf32> to vector<8x128xf32>
      %cst_76 = arith.constant dense<0.000000e+00> : vector<8x128xf32>
      %175 = tpu.matmul %131, %22, %cst_76 {dimension_numbers = #tpu.dot_dimension_numbers<[1], [0], [0], [1], [0, 0, 1, 1], [], []>} : vector<8x32xf32>, vector<32x128xf32>, vector<8x128xf32> -> vector<8x128xf32>
      %176 = arith.addf %175, %174 : vector<8x128xf32>
      %177 = vector.extract_strided_slice %176 {offsets = [0, 0], sizes = [8, 32], strides = [1, 1]} : vector<8x128xf32> to vector<8x32xf32>
      %178 = arith.negf %177 : vector<8x32xf32>
      %179 = math.exp %178 : vector<8x32xf32>
      %cst_77 = arith.constant 1.000000e+00 : f32
      %180 = vector.broadcast %cst_77 : f32 to vector<8x32xf32>
      %181 = arith.addf %180, %179 : vector<8x32xf32>
      %182 = arith.divf %180, %181 : vector<8x32xf32>
      %183 = vector.extract_strided_slice %176 {offsets = [0, 32], sizes = [8, 32], strides = [1, 1]} : vector<8x128xf32> to vector<8x32xf32>
      %184 = arith.negf %183 : vector<8x32xf32>
      %185 = math.exp %184 : vector<8x32xf32>
      %cst_78 = arith.constant 1.000000e+00 : f32
      %186 = vector.broadcast %cst_78 : f32 to vector<8x32xf32>
      %187 = arith.addf %186, %185 : vector<8x32xf32>
      %188 = arith.divf %186, %187 : vector<8x32xf32>
      %189 = vector.extract_strided_slice %176 {offsets = [0, 64], sizes = [8, 32], strides = [1, 1]} : vector<8x128xf32> to vector<8x32xf32>
      %190 = math.tanh %189 : vector<8x32xf32>
      %191 = vector.extract_strided_slice %176 {offsets = [0, 96], sizes = [8, 32], strides = [1, 1]} : vector<8x128xf32> to vector<8x32xf32>
      %192 = arith.negf %191 : vector<8x32xf32>
      %193 = math.exp %192 : vector<8x32xf32>
      %cst_79 = arith.constant 1.000000e+00 : f32
      %194 = vector.broadcast %cst_79 : f32 to vector<8x32xf32>
      %195 = arith.addf %194, %193 : vector<8x32xf32>
      %196 = arith.divf %194, %195 : vector<8x32xf32>
      %197 = arith.mulf %188, %134 : vector<8x32xf32>
      %198 = arith.mulf %182, %190 : vector<8x32xf32>
      %199 = arith.addf %197, %198 : vector<8x32xf32>
      %200 = math.tanh %199 : vector<8x32xf32>
      %201 = arith.mulf %196, %200 : vector<8x32xf32>
      %cst_80 = arith.constant 0.000000e+00 : f32
      %202 = vector.shape_cast %138 : vector<8x1xi1> to vector<8x1xi1>
      %203 = vector.broadcast %202 : vector<8x1xi1> to vector<8x32xi1>
      %204 = vector.broadcast %cst_80 : f32 to vector<8x32xf32>
      %205 = arith.select %203, %171, %204 : vector<8x32xi1>, vector<8x32xf32>
      %206 = arith.index_cast %38 : i32 to index
      %c0_81 = arith.constant 0 : index
      %c0_82 = arith.constant 0 : index
      %207 = vector.load %arg11[%206, %c0_81, %c0_82] : memref<8x8x32xf32, #tpu.memory_space<vmem>>, vector<1x8x32xf32>
      %208 = vector.shape_cast %207 : vector<1x8x32xf32> to vector<8x32xf32>
      %209 = vector.shape_cast %205 : vector<8x32xf32> to vector<1x8x32xf32>
      tpu.vector_store %arg11[%206, %c0_81, %c0_82], %209 {strides = array<i32>} : memref<8x8x32xf32, #tpu.memory_space<vmem>>, vector<1x8x32xf32>,
      %cst_83 = arith.constant 0.000000e+00 : f32
      %210 = vector.shape_cast %141 : vector<8x1xi1> to vector<8x1xi1>
      %211 = vector.broadcast %210 : vector<8x1xi1> to vector<8x32xi1>
      %212 = vector.broadcast %cst_83 : f32 to vector<8x32xf32>
      %213 = arith.select %211, %201, %212 : vector<8x32xi1>, vector<8x32xf32>
      %214 = arith.index_cast %135 : i32 to index
      %c0_84 = arith.constant 0 : index
      %c0_85 = arith.constant 0 : index
      %215 = vector.load %arg12[%214, %c0_84, %c0_85] : memref<8x8x32xf32, #tpu.memory_space<vmem>>, vector<1x8x32xf32>
      %216 = vector.shape_cast %215 : vector<1x8x32xf32> to vector<8x32xf32>
      %217 = vector.shape_cast %213 : vector<8x32xf32> to vector<1x8x32xf32>
      tpu.vector_store %arg12[%214, %c0_84, %c0_85], %217 {strides = array<i32>} : memref<8x8x32xf32, #tpu.memory_space<vmem>>, vector<1x8x32xf32>,
      %218 = vector.shape_cast %138 : vector<8x1xi1> to vector<8x1xi1>
      %219 = vector.broadcast %218 : vector<8x1xi1> to vector<8x32xi1>
      %220 = arith.select %219, %171, %125 : vector<8x32xi1>, vector<8x32xf32>
      %221 = vector.shape_cast %138 : vector<8x1xi1> to vector<8x1xi1>
      %222 = vector.broadcast %221 : vector<8x1xi1> to vector<8x32xi1>
      %223 = arith.select %222, %169, %128 : vector<8x32xi1>, vector<8x32xf32>
      %224 = vector.shape_cast %141 : vector<8x1xi1> to vector<8x1xi1>
      %225 = vector.broadcast %224 : vector<8x1xi1> to vector<8x32xi1>
      %226 = arith.select %225, %201, %131 : vector<8x32xi1>, vector<8x32xf32>
      %227 = vector.shape_cast %141 : vector<8x1xi1> to vector<8x1xi1>
      %228 = vector.broadcast %227 : vector<8x1xi1> to vector<8x32xi1>
      %229 = arith.select %228, %199, %134 : vector<8x32xi1>, vector<8x32xf32>
      scf.yield %220, %223, %226, %229 : vector<8x32xf32>, vector<8x32xf32>, vector<8x32xf32>, vector<8x32xf32>
    }
    %c4_i32_38 = arith.constant 4 : i32
    %c0_39 = arith.constant 0 : index
    %c0_40 = arith.constant 0 : index
    %33 = vector.load %arg15[%c0_39, %c0_40] : memref<8x32xf32, #tpu.memory_space<vmem>>, vector<8x32xf32>
    tpu.vector_store %arg15[%c0_39, %c0_40], %32#0 {strides = array<i32>} : memref<8x32xf32, #tpu.memory_space<vmem>>, vector<8x32xf32>,
    %c0_41 = arith.constant 0 : index
    %c0_42 = arith.constant 0 : index
    %34 = vector.load %arg16[%c0_41, %c0_42] : memref<8x32xf32, #tpu.memory_space<vmem>>, vector<8x32xf32>
    tpu.vector_store %arg16[%c0_41, %c0_42], %32#1 {strides = array<i32>} : memref<8x32xf32, #tpu.memory_space<vmem>>, vector<8x32xf32>,
    %c0_43 = arith.constant 0 : index
    %c0_44 = arith.constant 0 : index
    %35 = vector.load %arg17[%c0_43, %c0_44] : memref<8x32xf32, #tpu.memory_space<vmem>>, vector<8x32xf32>
    tpu.vector_store %arg17[%c0_43, %c0_44], %32#2 {strides = array<i32>} : memref<8x32xf32, #tpu.memory_space<vmem>>, vector<8x32xf32>,
    %c0_45 = arith.constant 0 : index
    %c0_46 = arith.constant 0 : index
    %36 = vector.load %arg18[%c0_45, %c0_46] : memref<8x32xf32, #tpu.memory_space<vmem>>, vector<8x32xf32>
    tpu.vector_store %arg18[%c0_45, %c0_46], %32#3 {strides = array<i32>} : memref<8x32xf32, #tpu.memory_space<vmem>>, vector<8x32xf32>,
    return
  }
  func.func @transform_0(%arg0: i32, %arg1: i32) -> (i32, i32) {
    %c0_i32 = arith.constant 0 : i32
    %c0_i32_0 = arith.constant 0 : i32
    return %arg0, %c0_i32 : i32, i32
  }
  func.func @transform_1(%arg0: i32, %arg1: i32) -> (i32, i32, i32) {
    %c0_i32 = arith.constant 0 : i32
    %c0_i32_0 = arith.constant 0 : i32
    return %arg1, %arg0, %c0_i32 : i32, i32, i32
  }
  func.func @transform_2(%arg0: i32, %arg1: i32) -> (i32, i32, i32) {
    %c0_i32 = arith.constant 0 : i32
    %0 = arith.subi %c0_i32, %arg1 : i32
    %c0_i32_0 = arith.constant 0 : i32
    %c0_i32_1 = arith.constant 0 : i32
    return %0, %arg0, %c0_i32_0 : i32, i32, i32
  }
  func.func @transform_3(%arg0: i32, %arg1: i32) -> (i32, i32) {
    %c0_i32 = arith.constant 0 : i32
    %c0_i32_0 = arith.constant 0 : i32
    %c0_i32_1 = arith.constant 0 : i32
    return %c0_i32, %c0_i32_0 : i32, i32
  }
  func.func @transform_4(%arg0: i32, %arg1: i32) -> (i32, i32) {
    %c0_i32 = arith.constant 0 : i32
    %c0_i32_0 = arith.constant 0 : i32
    %c0_i32_1 = arith.constant 0 : i32
    return %c0_i32, %c0_i32_0 : i32, i32
  }
  func.func @transform_5(%arg0: i32, %arg1: i32) -> (i32, i32) {
    %c0_i32 = arith.constant 0 : i32
    %c0_i32_0 = arith.constant 0 : i32
    %c0_i32_1 = arith.constant 0 : i32
    return %c0_i32, %c0_i32_0 : i32, i32
  }
  func.func @transform_6(%arg0: i32, %arg1: i32) -> (i32, i32) {
    %c0_i32 = arith.constant 0 : i32
    %c0_i32_0 = arith.constant 0 : i32
    %c0_i32_1 = arith.constant 0 : i32
    return %c0_i32, %c0_i32_0 : i32, i32
  }
  func.func @transform_7(%arg0: i32, %arg1: i32) -> (i32, i32) {
    %c0_i32 = arith.constant 0 : i32
    %c0_i32_0 = arith.constant 0 : i32
    %c0_i32_1 = arith.constant 0 : i32
    return %c0_i32, %c0_i32_0 : i32, i32
  }
  func.func @transform_8(%arg0: i32, %arg1: i32) -> (i32, i32) {
    %c0_i32 = arith.constant 0 : i32
    %c0_i32_0 = arith.constant 0 : i32
    %c0_i32_1 = arith.constant 0 : i32
    return %c0_i32, %c0_i32_0 : i32, i32
  }
  func.func @transform_9(%arg0: i32, %arg1: i32) -> (i32, i32, i32) {
    %c0_i32 = arith.constant 0 : i32
    %c0_i32_0 = arith.constant 0 : i32
    return %arg1, %arg0, %c0_i32 : i32, i32, i32
  }
  func.func @transform_10(%arg0: i32, %arg1: i32) -> (i32, i32, i32) {
    %c0_i32 = arith.constant 0 : i32
    %0 = arith.subi %c0_i32, %arg1 : i32
    %c0_i32_0 = arith.constant 0 : i32
    %c0_i32_1 = arith.constant 0 : i32
    return %0, %arg0, %c0_i32_0 : i32, i32, i32
  }
}

</mosaic_0001>

<llo_original>
// kernel: tpu_custom_call.1
$region0: #{tpu_custom_call.1}
  #allocation0 [shape = 'u32[]', space=smem, size = 0x4, offset = 0x4, fixed_abs, tag = 'smem constant byte address 0x4 - core index']
  #allocation1 [shape = 'u32[144,128]{1,0:T(1,128)}', space=vmem, size = 0x12000, scoped, tag = 'internal scratch']
  #allocation2 [shape = 'f32[8,8,128]{2,1,0:T(8,128)}', space=vmem, size = 0x8000, scoped, tag = 'scratch operand']
  #allocation3 [shape = 'f32[8,8,128]{2,1,0:T(8,128)}', space=vmem, size = 0x8000, scoped, tag = 'scratch operand']
  #allocation4 [shape = 'f32[8,32]{1,0:T(8,128)}', space=vmem, size = 0x1000, scoped, tag = 'scratch operand']
  #allocation5 [shape = 'f32[8,32]{1,0:T(8,128)}', space=vmem, size = 0x1000, scoped, tag = 'scratch operand']
  #allocation6 [shape = 'f32[8,32]{1,0:T(8,128)}', space=vmem, size = 0x1000, scoped, tag = 'scratch operand']
  #allocation7 [shape = 'f32[8,32]{1,0:T(8,128)}', space=vmem, size = 0x1000, scoped, tag = 'scratch operand']
  %s0 = inlined_call_operand.vmem [shape: s32[8,1], index: 0, kind: input, shape index: {}]
  %s1 = inlined_call_operand.hbm [shape: f32[8,8,32], index: 1, kind: input, shape index: {}]
  %s2 = inlined_call_operand.hbm [shape: f32[8,8,32], index: 2, kind: input, shape index: {}]
  %s3 = inlined_call_operand.hbm [shape: f32[32,128], index: 3, kind: input, shape index: {}]
  %s4 = inlined_call_operand.hbm [shape: f32[32,128], index: 4, kind: input, shape index: {}]
  %s5 = inlined_call_operand.hbm [shape: f32[32,128], index: 5, kind: input, shape index: {}]
  %s6 = inlined_call_operand.hbm [shape: f32[32,128], index: 6, kind: input, shape index: {}]
  %s7 = inlined_call_operand.vmem [shape: f32[1,128], index: 7, kind: input, shape index: {}]
  %s8 = inlined_call_operand.vmem [shape: f32[1,128], index: 8, kind: input, shape index: {}]
  %s9 = inlined_call_operand.hbm [shape: f32[8,8,32], index: 9, kind: output, shape index: {0}]
  %s10 = inlined_call_operand.hbm [shape: f32[8,8,32], index: 10, kind: output, shape index: {1}]
  %11 = xla_tuple %s9, %s10
  %s12 = sld [smem:[#allocation0]]
  $region89: #{tpu_custom_call.1} parent=0
    _
  %s14 = ssub.s32 1, %s12
  %s15 = scalar_select 0, %s14, %s12
  $region1: #{tpu_custom_call.1} parent=0
    #allocation8 [shape = 'u8[32768]{0}', space=vmem, size = 0x8000, scoped, tag = 'input window, operand 1, single buffered']
    #allocation9 [shape = 's32[1]{0}', space=sflag, size = 0x4, scoped, tag = 'scoped memory for tpu_custom_call.1']
    #allocation10 [shape = 's32[1]{0}', space=sflag, size = 0x4, scoped, tag = 'scoped memory for tpu_custom_call.1']
    #allocation11 [shape = 'u8[32768]{0}', space=vmem, size = 0x8000, scoped, tag = 'input window, operand 2, single buffered']
    #allocation12 [shape = 's32[1]{0}', space=sflag, size = 0x4, scoped, tag = 'scoped memory for tpu_custom_call.1']
    #allocation13 [shape = 'u8[16384]{0}', space=vmem, size = 0x4000, scoped, tag = 'input window, operand 3, single buffered']
    #allocation14 [shape = 'u8[16384]{0}', space=vmem, size = 0x4000, scoped, tag = 'input window, operand 4, single buffered']
    #allocation15 [shape = 's32[1]{0}', space=sflag, size = 0x4, scoped, tag = 'scoped memory for tpu_custom_call.1']
    #allocation16 [shape = 'u8[16384]{0}', space=vmem, size = 0x4000, scoped, tag = 'input window, operand 5, single buffered']
    #allocation17 [shape = 'u8[16384]{0}', space=vmem, size = 0x4000, scoped, tag = 'input window, operand 6, single buffered']
    #allocation18 [shape = 's32[1]{0}', space=sflag, size = 0x4, scoped, tag = 'scoped memory for tpu_custom_call.1']
    #allocation19 [shape = 'u8[32768]{0}', space=vmem, size = 0x8000, scoped, tag = 'output window, operand 0, single buffered']
    #allocation20 [shape = 'u8[32768]{0}', space=vmem, size = 0x8000, scoped, tag = 'output window, operand 1, single buffered']
    #allocation21 [shape = 's32[1]{0}', space=sflag, size = 0x4, scoped, tag = 'scoped memory for tpu_custom_call.1']
    %16 = vsyncpa [#allocation9], 0
    %17 = vsyncpa [#allocation12], 0
    %18 = vsyncpa [#allocation15], 0
    %19 = vsyncpa [#allocation18], 0
    %20 = vsyncpa [#allocation10], 0
    %21 = vsyncpa [#allocation21], 0
    // Predicated region
    $region2: #{tpu_custom_call.1} parent=1 // pred_check
      _
    $region3: #{tpu_custom_call.1} parent=1 // pred_check_branch
      %23 = sbr.rel (0) target = $region5
    $region4: #{tpu_custom_call.1} parent=1 // pred_region
      _
    $region5: #{tpu_custom_call.1} parent=1 // pred_fallthru
      _
    // Predicated region
    $region6: #{tpu_custom_call.1} parent=1 // pred_check
      _
    $region7: #{tpu_custom_call.1} parent=1 // pred_check_branch
      %25 = sbr.rel (0) target = $region9
    $region8: #{tpu_custom_call.1} parent=1 // pred_region
      %s27 = ssub.s32 1024, 1024
      %28 = vsyncadd [#allocation9], %s27
      %s29 = sshll.u32 [#allocation8], 4
      %s30 = int_to_ptr.vmem [resolvable:$true] %s29
      %35 = dma.hbm_to_vmem [thread:$0]  %s1, 1024, %s30, [#allocation9], 128, 128, 8
    $region9: #{tpu_custom_call.1} parent=1 // pred_fallthru
      _
    // Predicated region
    $region10: #{tpu_custom_call.1} parent=1 // pred_check
      _
    $region11: #{tpu_custom_call.1} parent=1 // pred_check_branch
      %37 = sbr.rel (0) target = $region13
    $region12: #{tpu_custom_call.1} parent=1 // pred_region
      %s38 = ssub.s32 0, 0
      %s39 = smul.u32 8, %s38
      %s41 = ssub.s32 1024, 1024
      %42 = vsyncadd [#allocation12], %s41
      %s43 = smul.addr %s39, 128
      %s44 = scalar_lea.hbm %s2, %s43
      %s45 = sshll.u32 [#allocation11], 4
      %s46 = int_to_ptr.vmem [resolvable:$true] %s45
      %51 = dma.hbm_to_vmem [thread:$0]  %s44, 1024, %s46, [#allocation12], 128, 128, 8
    $region13: #{tpu_custom_call.1} parent=1 // pred_fallthru
      _
    // Predicated region
    $region14: #{tpu_custom_call.1} parent=1 // pred_check
      _
    $region15: #{tpu_custom_call.1} parent=1 // pred_check_branch
      %53 = sbr.rel (0) target = $region17
    $region16: #{tpu_custom_call.1} parent=1 // pred_region
      %s55 = ssub.s32 512, 512
      %56 = vsyncadd [#allocation12], %s55
      %s57 = sshll.u32 [#allocation13], 4
      %s58 = int_to_ptr.vmem [resolvable:$true] %s57
      %63 = dma.hbm_to_vmem [thread:$0]  %s3, 512, %s58, [#allocation12], 128, 128, 8
    $region17: #{tpu_custom_call.1} parent=1 // pred_fallthru
      _
    // Predicated region
    $region18: #{tpu_custom_call.1} parent=1 // pred_check
      _
    $region19: #{tpu_custom_call.1} parent=1 // pred_check_branch
      %65 = sbr.rel (0) target = $region21
    $region20: #{tpu_custom_call.1} parent=1 // pred_region
      %s67 = ssub.s32 512, 512
      %68 = vsyncadd [#allocation15], %s67
      %s69 = sshll.u32 [#allocation14], 4
      %s70 = int_to_ptr.vmem [resolvable:$true] %s69
      %75 = dma.hbm_to_vmem [thread:$0]  %s4, 512, %s70, [#allocation15], 128, 128, 8
    $region21: #{tpu_custom_call.1} parent=1 // pred_fallthru
      _
    // Predicated region
    $region22: #{tpu_custom_call.1} parent=1 // pred_check
      _
    $region23: #{tpu_custom_call.1} parent=1 // pred_check_branch
      %77 = sbr.rel (0) target = $region25
    $region24: #{tpu_custom_call.1} parent=1 // pred_region
      %s79 = ssub.s32 512, 512
      %80 = vsyncadd [#allocation15], %s79
      %s81 = sshll.u32 [#allocation16], 4
      %s82 = int_to_ptr.vmem [resolvable:$true] %s81
      %87 = dma.hbm_to_vmem [thread:$0]  %s5, 512, %s82, [#allocation15], 128, 128, 8
    $region25: #{tpu_custom_call.1} parent=1 // pred_fallthru
      _
    // Predicated region
    $region26: #{tpu_custom_call.1} parent=1 // pred_check
      _
    $region27: #{tpu_custom_call.1} parent=1 // pred_check_branch
      %89 = sbr.rel (0) target = $region29
    $region28: #{tpu_custom_call.1} parent=1 // pred_region
      %s91 = ssub.s32 512, 512
      %92 = vsyncadd [#allocation18], %s91
      %s93 = sshll.u32 [#allocation17], 4
      %s94 = int_to_ptr.vmem [resolvable:$true] %s93
      %99 = dma.hbm_to_vmem [thread:$0]  %s6, 512, %s94, [#allocation18], 128, 128, 8
    $region29: #{tpu_custom_call.1} parent=1 // pred_fallthru
      _
    // Predicated region
    $region30: #{tpu_custom_call.1} parent=1 // pred_check
      _
    $region31: #{tpu_custom_call.1} parent=1 // pred_check_branch
      %101 = sbr.rel (0) target = $region33
    $region32: #{tpu_custom_call.1} parent=1 // pred_region
      _
    $region33: #{tpu_custom_call.1} parent=1 // pred_fallthru
      _
    // Predicated region
    $region34: #{tpu_custom_call.1} parent=1 // pred_check
      _
    $region35: #{tpu_custom_call.1} parent=1 // pred_check_branch
      %103 = sbr.rel (0) target = $region37
    $region36: #{tpu_custom_call.1} parent=1 // pred_region
      _
    $region37: #{tpu_custom_call.1} parent=1 // pred_fallthru
      _
    // Predicated region
    $region38: #{tpu_custom_call.1} parent=1 // pred_check
      _
    $region39: #{tpu_custom_call.1} parent=1 // pred_check_branch
      %105 = sbr.rel (0) target = $region41
    $region40: #{tpu_custom_call.1} parent=1 // pred_region
      %106 = dma.done [#allocation9], 1024
    $region41: #{tpu_custom_call.1} parent=1 // pred_fallthru
      _
    // Predicated region
    $region42: #{tpu_custom_call.1} parent=1 // pred_check
      _
    $region43: #{tpu_custom_call.1} parent=1 // pred_check_branch
      %108 = sbr.rel (0) target = $region45
    $region44: #{tpu_custom_call.1} parent=1 // pred_region
      %109 = dma.done [#allocation12], 1024
    $region45: #{tpu_custom_call.1} parent=1 // pred_fallthru
      _
    // Predicated region
    $region46: #{tpu_custom_call.1} parent=1 // pred_check
      _
    $region47: #{tpu_custom_call.1} parent=1 // pred_check_branch
      %111 = sbr.rel (0) target = $region49
    $region48: #{tpu_custom_call.1} parent=1 // pred_region
      %112 = dma.done [#allocation12], 512
    $region49: #{tpu_custom_call.1} parent=1 // pred_fallthru
      _
    // Predicated region
    $region50: #{tpu_custom_call.1} parent=1 // pred_check
      _
    $region51: #{tpu_custom_call.1} parent=1 // pred_check_branch
      %114 = sbr.rel (0) target = $region53
    $region52: #{tpu_custom_call.1} parent=1 // pred_region
      %115 = dma.done [#allocation15], 512
    $region53: #{tpu_custom_call.1} parent=1 // pred_fallthru
      _
    // Predicated region
    $region54: #{tpu_custom_call.1} parent=1 // pred_check
      _
    $region55: #{tpu_custom_call.1} parent=1 // pred_check_branch
      %117 = sbr.rel (0) target = $region57
    $region56: #{tpu_custom_call.1} parent=1 // pred_region
      %118 = dma.done [#allocation15], 512
    $region57: #{tpu_custom_call.1} parent=1 // pred_fallthru
      _
    // Predicated region
    $region58: #{tpu_custom_call.1} parent=1 // pred_check
      _
    $region59: #{tpu_custom_call.1} parent=1 // pred_check_branch
      %120 = sbr.rel (0) target = $region61
    $region60: #{tpu_custom_call.1} parent=1 // pred_region
      %121 = dma.done [#allocation18], 512
    $region61: #{tpu_custom_call.1} parent=1 // pred_fallthru
      _
    %s122 = ssub.s32 0, 0
    %s123 = smul.u32 8, %s122
    %s124 = ssub.s32 0, 0
    %s125 = smul.u32 8, %s124
    %p126 = scmp.eq.s32.totalorder 0, 0
    // Predicated region
    $region62: #{tpu_custom_call.1} parent=1 // pred_check
      %p127 = pneg %p126
    $region63: #{tpu_custom_call.1} parent=1 // pred_check_branch
      %129 = sbr.rel (%p127) target = $region65
    $region64: #{tpu_custom_call.1} parent=1 // pred_region
      %vm130 = vcmask 261120
      %131 = vst.msk [vmem:[#allocation4] sm:$0xff] %vm130, 0.0
      %132 = vst.msk [vmem:[#allocation5] sm:$0xff] %vm130, 0.0
      %133 = vst.msk [vmem:[#allocation6] sm:$0xff] %vm130, 0.0
      %134 = vst.msk [vmem:[#allocation7] sm:$0xff] %vm130, 0.0
    $region65: #{tpu_custom_call.1} parent=1 // pred_fallthru
      _
    %v135 = vld [vmem:[#allocation8] sm:$0xff]
    %v136 = vld [vmem:[#allocation8 + $0x8] sm:$0xff]
    %v137 = vld [vmem:[#allocation8 + $0x10] sm:$0xff]
    %v138 = vld [vmem:[#allocation8 + $0x18] sm:$0xff]
    %v139 = vld [vmem:[#allocation8 + $0x20] sm:$0xff]
    %v140 = vld [vmem:[#allocation8 + $0x28] sm:$0xff]
    %v141 = vld [vmem:[#allocation8 + $0x30] sm:$0xff]
    %v142 = vld [vmem:[#allocation8 + $0x38] sm:$0xff]
    %v143 = vld [vmem:[#allocation11] sm:$0xff]
    %v144 = vld [vmem:[#allocation11 + $0x8] sm:$0xff]
    %v145 = vld [vmem:[#allocation11 + $0x10] sm:$0xff]
    %v146 = vld [vmem:[#allocation11 + $0x18] sm:$0xff]
    %v147 = vld [vmem:[#allocation11 + $0x20] sm:$0xff]
    %v148 = vld [vmem:[#allocation11 + $0x28] sm:$0xff]
    %v149 = vld [vmem:[#allocation11 + $0x30] sm:$0xff]
    %v150 = vld [vmem:[#allocation11 + $0x38] sm:$0xff]
    %v151 = vld [vmem:[#allocation13] sm:$0xff]
    %v152 = vld [vmem:[#allocation13 + $0x8] sm:$0xff]
    %v153 = vld [vmem:[#allocation13 + $0x10] sm:$0xff]
    %v154 = vld [vmem:[#allocation13 + $0x18] sm:$0xff]
    %v155 = vld [vmem:[#allocation14] sm:$0xff]
    %v156 = vld [vmem:[#allocation14 + $0x8] sm:$0xff]
    %v157 = vld [vmem:[#allocation14 + $0x10] sm:$0xff]
    %v158 = vld [vmem:[#allocation14 + $0x18] sm:$0xff]
    %v159 = vld [vmem:[%s7] sm:$0x1]
    %v161 = vlaneseq
    %v162 = vshrl.u32 %v161, 7
    %v163 = vsub.s32 0, %v162
    %v164 = vrot.slane %v159, %v163
    %vm166 = vcmask 261120
    %v168 = vsel %vm166, %v135, 0
    %v171 = vsel %vm166, %v136, 0
    %v174 = vsel %vm166, %v137, 0
    %v177 = vsel %vm166, %v138, 0
    %v180 = vsel %vm166, %v139, 0
    %v183 = vsel %vm166, %v140, 0
    %v186 = vsel %vm166, %v141, 0
    %v189 = vsel %vm166, %v142, 0
    %191 = vmatprep.subr.mxu0 0.0
    %192 = vmatpush1.msra.mxu0 %v151
    %193 = vmatprep.subr.mxu0 0.0
    %194 = vmatpush1.msra.mxu0 %v152
    %195 = vmatprep.subr.mxu0 0.0
    %196 = vmatpush1.msra.mxu0 %v153
    %197 = vmatprep.subr.mxu0 0.0
    %198 = vmatpush1.msra.mxu0 %v154
    %199 = vmatprep.subr.mxu0 0.0
    %200 = vmatpush1.msra.mxu0 0.0
    %201 = vmatprep.subr.mxu0 0.0
    %202 = vmatpush1.msra.mxu0 0.0
    %203 = vmatprep.subr.mxu0 0.0
    %204 = vmatpush1.msra.mxu0 0.0
    %205 = vmatprep.subr.mxu0 0.0
    %206 = vmatpush1.msra.mxu0 0.0
    %207 = vmatprep.subr.mxu0 0.0
    %208 = vmatpush1.msra.mxu0 0.0
    %209 = vmatprep.subr.mxu0 0.0
    %210 = vmatpush1.msra.mxu0 0.0
    %211 = vmatprep.subr.mxu0 0.0
    %212 = vmatpush1.msra.mxu0 0.0
    %213 = vmatprep.subr.mxu0 0.0
    %214 = vmatpush1.msra.mxu0 0.0
    %215 = vmatprep.subr.mxu0 0.0
    %216 = vmatpush1.msra.mxu0 0.0
    %217 = vmatprep.subr.mxu0 0.0
    %218 = vmatpush1.msra.mxu0 0.0
    %219 = vmatprep.subr.mxu0 0.0
    %220 = vmatpush1.msra.mxu0 0.0
    %221 = vmatprep.subr.mxu0 0.0
    %222 = vmatpush1.msra.mxu0 0.0
    %223 = vmatprep.subr.mxu0 0.0
    %224 = vmatpush1.msra.mxu0 0.0
    %225 = vmatprep.subr.mxu0 0.0
    %226 = vmatpush1.msra.mxu0 0.0
    %227 = vmatprep.subr.mxu0 0.0
    %228 = vmatpush1.msra.mxu0 0.0
    %229 = vmatprep.subr.mxu0 0.0
    %230 = vmatpush1.msra.mxu0 0.0
    %231 = vmatprep.subr.mxu0 0.0
    %232 = vmatpush1.msra.mxu0 0.0
    %233 = vmatprep.subr.mxu0 0.0
    %234 = vmatpush1.msra.mxu0 0.0
    %235 = vmatprep.subr.mxu0 0.0
    %236 = vmatpush1.msra.mxu0 0.0
    %237 = vmatprep.subr.mxu0 0.0
    %238 = vmatpush1.msra.mxu0 0.0
    %239 = vmatprep.subr.mxu0 0.0
    %240 = vmatpush1.msra.mxu0 0.0
    %241 = vmatprep.subr.mxu0 0.0
    %242 = vmatpush1.msra.mxu0 0.0
    %243 = vmatprep.subr.mxu0 0.0
    %244 = vmatpush1.msra.mxu0 0.0
    %245 = vmatprep.subr.mxu0 0.0
    %246 = vmatpush1.msra.mxu0 0.0
    %247 = vmatprep.subr.mxu0 0.0
    %248 = vmatpush1.msra.mxu0 0.0
    %249 = vmatprep.subr.mxu0 0.0
    %250 = vmatpush1.msra.mxu0 0.0
    %251 = vmatprep.subr.mxu0 0.0
    %252 = vmatpush1.msra.mxu0 0.0
    %253 = vmatprep.subr.mxu0 0.0
    %254 = vmatpush1.msra.mxu0 0.0
    %255 = vmatprep.mubr.f32.mxu0 0.0
    %256 = vmatmul.mubr.f32.gmra.mrb[0].mxu0 %v168
    %v257 = vpop.f32.mrb[0].mxu0
    %v258 = vadd.f32 %v164, %v257
    %v259 = vpop.f32.mrb[0].mxu0
    %260 = vmatprep.mubr.f32.mxu0 0.0
    %261 = vmatmul.mubr.f32.gmra.mrb[0].mxu0 %v171
    %v262 = vpop.f32.mrb[0].mxu0
    %v263 = vadd.f32 %v164, %v262
    %v264 = vpop.f32.mrb[0].mxu0
    %265 = vmatprep.mubr.f32.mxu0 0.0
    %266 = vmatmul.mubr.f32.gmra.mrb[0].mxu0 %v174
    %v267 = vpop.f32.mrb[0].mxu0
    %v268 = vadd.f32 %v164, %v267
    %v269 = vpop.f32.mrb[0].mxu0
    %270 = vmatprep.mubr.f32.mxu0 0.0
    %271 = vmatmul.mubr.f32.gmra.mrb[0].mxu0 %v177
    %v272 = vpop.f32.mrb[0].mxu0
    %v273 = vadd.f32 %v164, %v272
    %v274 = vpop.f32.mrb[0].mxu0
    %275 = vmatprep.mubr.f32.mxu0 0.0
    %276 = vmatmul.mubr.f32.gmra.mrb[0].mxu0 %v180
    %v277 = vpop.f32.mrb[0].mxu0
    %v278 = vadd.f32 %v164, %v277
    %v279 = vpop.f32.mrb[0].mxu0
    %280 = vmatprep.mubr.f32.mxu0 0.0
    %281 = vmatmul.mubr.f32.gmra.mrb[0].mxu0 %v183
    %v282 = vpop.f32.mrb[0].mxu0
    %v283 = vadd.f32 %v164, %v282
    %v284 = vpop.f32.mrb[0].mxu0
    %285 = vmatprep.mubr.f32.mxu0 0.0
    %286 = vmatmul.mubr.f32.gmra.mrb[0].mxu0 %v186
    %v287 = vpop.f32.mrb[0].mxu0
    %v288 = vadd.f32 %v164, %v287
    %v289 = vpop.f32.mrb[0].mxu0
    %290 = vmatprep.mubr.f32.mxu0 0.0
    %291 = vmatmul.mubr.f32.gmra.mrb[0].mxu0 %v189
    %v292 = vpop.f32.mrb[0].mxu0
    %v293 = vadd.f32 %v164, %v292
    %v294 = vpop.f32.mrb[0].mxu0
    %295 = vdwg.mxu0
    %296 = vst [vmem:[#allocation2] sm:$0xff] %v258
    %297 = vst [vmem:[#allocation2 + $0x8] sm:$0xff] %v263
    %298 = vst [vmem:[#allocation2 + $0x10] sm:$0xff] %v268
    %299 = vst [vmem:[#allocation2 + $0x18] sm:$0xff] %v273
    %300 = vst [vmem:[#allocation2 + $0x20] sm:$0xff] %v278
    %301 = vst [vmem:[#allocation2 + $0x28] sm:$0xff] %v283
    %302 = vst [vmem:[#allocation2 + $0x30] sm:$0xff] %v288
    %303 = vst [vmem:[#allocation2 + $0x38] sm:$0xff] %v293
    %v304 = vld [vmem:[%s8] sm:$0x1]
    %v306 = vlaneseq
    %v307 = vshrl.u32 %v306, 7
    %v308 = vsub.s32 0, %v307
    %v309 = vrot.slane %v304, %v308
    %v312 = vsel %vm166, %v143, 0
    %v315 = vsel %vm166, %v144, 0
    %v318 = vsel %vm166, %v145, 0
    %v321 = vsel %vm166, %v146, 0
    %v324 = vsel %vm166, %v147, 0
    %v327 = vsel %vm166, %v148, 0
    %v330 = vsel %vm166, %v149, 0
    %v333 = vsel %vm166, %v150, 0
    %335 = vmatprep.subr.mxu0 0.0
    %336 = vmatpush1.msra.mxu0 %v155
    %337 = vmatprep.subr.mxu0 0.0
    %338 = vmatpush1.msra.mxu0 %v156
    %339 = vmatprep.subr.mxu0 0.0
    %340 = vmatpush1.msra.mxu0 %v157
    %341 = vmatprep.subr.mxu0 0.0
    %342 = vmatpush1.msra.mxu0 %v158
    %343 = vmatprep.subr.mxu0 0.0
    %344 = vmatpush1.msra.mxu0 0.0
    %345 = vmatprep.subr.mxu0 0.0
    %346 = vmatpush1.msra.mxu0 0.0
    %347 = vmatprep.subr.mxu0 0.0
    %348 = vmatpush1.msra.mxu0 0.0
    %349 = vmatprep.subr.mxu0 0.0
    %350 = vmatpush1.msra.mxu0 0.0
    %351 = vmatprep.subr.mxu0 0.0
    %352 = vmatpush1.msra.mxu0 0.0
    %353 = vmatprep.subr.mxu0 0.0
    %354 = vmatpush1.msra.mxu0 0.0
    %355 = vmatprep.subr.mxu0 0.0
    %356 = vmatpush1.msra.mxu0 0.0
    %357 = vmatprep.subr.mxu0 0.0
    %358 = vmatpush1.msra.mxu0 0.0
    %359 = vmatprep.subr.mxu0 0.0
    %360 = vmatpush1.msra.mxu0 0.0
    %361 = vmatprep.subr.mxu0 0.0
    %362 = vmatpush1.msra.mxu0 0.0
    %363 = vmatprep.subr.mxu0 0.0
    %364 = vmatpush1.msra.mxu0 0.0
    %365 = vmatprep.subr.mxu0 0.0
    %366 = vmatpush1.msra.mxu0 0.0
    %367 = vmatprep.subr.mxu0 0.0
    %368 = vmatpush1.msra.mxu0 0.0
    %369 = vmatprep.subr.mxu0 0.0
    %370 = vmatpush1.msra.mxu0 0.0
    %371 = vmatprep.subr.mxu0 0.0
    %372 = vmatpush1.msra.mxu0 0.0
    %373 = vmatprep.subr.mxu0 0.0
    %374 = vmatpush1.msra.mxu0 0.0
    %375 = vmatprep.subr.mxu0 0.0
    %376 = vmatpush1.msra.mxu0 0.0
    %377 = vmatprep.subr.mxu0 0.0
    %378 = vmatpush1.msra.mxu0 0.0
    %379 = vmatprep.subr.mxu0 0.0
    %380 = vmatpush1.msra.mxu0 0.0
    %381 = vmatprep.subr.mxu0 0.0
    %382 = vmatpush1.msra.mxu0 0.0
    %383 = vmatprep.subr.mxu0 0.0
    %384 = vmatpush1.msra.mxu0 0.0
    %385 = vmatprep.subr.mxu0 0.0
    %386 = vmatpush1.msra.mxu0 0.0
    %387 = vmatprep.subr.mxu0 0.0
    %388 = vmatpush1.msra.mxu0 0.0
    %389 = vmatprep.subr.mxu0 0.0
    %390 = vmatpush1.msra.mxu0 0.0
    %391 = vmatprep.subr.mxu0 0.0
    %392 = vmatpush1.msra.mxu0 0.0
    %393 = vmatprep.subr.mxu0 0.0
    %394 = vmatpush1.msra.mxu0 0.0
    %395 = vmatprep.subr.mxu0 0.0
    %396 = vmatpush1.msra.mxu0 0.0
    %397 = vmatprep.subr.mxu0 0.0
    %398 = vmatpush1.msra.mxu0 0.0
    %399 = vmatprep.mubr.f32.mxu0 0.0
    %400 = vmatmul.mubr.f32.gmra.mrb[0].mxu0 %v312
    %v401 = vpop.f32.mrb[0].mxu0
    %v402 = vadd.f32 %v309, %v401
    %v403 = vpop.f32.mrb[0].mxu0
    %404 = vmatprep.mubr.f32.mxu0 0.0
    %405 = vmatmul.mubr.f32.gmra.mrb[0].mxu0 %v315
    %v406 = vpop.f32.mrb[0].mxu0
    %v407 = vadd.f32 %v309, %v406
    %v408 = vpop.f32.mrb[0].mxu0
    %409 = vmatprep.mubr.f32.mxu0 0.0
    %410 = vmatmul.mubr.f32.gmra.mrb[0].mxu0 %v318
    %v411 = vpop.f32.mrb[0].mxu0
    %v412 = vadd.f32 %v309, %v411
    %v413 = vpop.f32.mrb[0].mxu0
    %414 = vmatprep.mubr.f32.mxu0 0.0
    %415 = vmatmul.mubr.f32.gmra.mrb[0].mxu0 %v321
    %v416 = vpop.f32.mrb[0].mxu0
    %v417 = vadd.f32 %v309, %v416
    %v418 = vpop.f32.mrb[0].mxu0
    %419 = vmatprep.mubr.f32.mxu0 0.0
    %420 = vmatmul.mubr.f32.gmra.mrb[0].mxu0 %v324
    %v421 = vpop.f32.mrb[0].mxu0
    %v422 = vadd.f32 %v309, %v421
    %v423 = vpop.f32.mrb[0].mxu0
    %424 = vmatprep.mubr.f32.mxu0 0.0
    %425 = vmatmul.mubr.f32.gmra.mrb[0].mxu0 %v327
    %v426 = vpop.f32.mrb[0].mxu0
    %v427 = vadd.f32 %v309, %v426
    %v428 = vpop.f32.mrb[0].mxu0
    %429 = vmatprep.mubr.f32.mxu0 0.0
    %430 = vmatmul.mubr.f32.gmra.mrb[0].mxu0 %v330
    %v431 = vpop.f32.mrb[0].mxu0
    %v432 = vadd.f32 %v309, %v431
    %v433 = vpop.f32.mrb[0].mxu0
    %434 = vmatprep.mubr.f32.mxu0 0.0
    %435 = vmatmul.mubr.f32.gmra.mrb[0].mxu0 %v333
    %v436 = vpop.f32.mrb[0].mxu0
    %v437 = vadd.f32 %v309, %v436
    %v438 = vpop.f32.mrb[0].mxu0
    %439 = vdwg.mxu0
    %440 = vst [vmem:[#allocation3] sm:$0xff] %v402
    %441 = vst [vmem:[#allocation3 + $0x8] sm:$0xff] %v407
    %442 = vst [vmem:[#allocation3 + $0x10] sm:$0xff] %v412
    %443 = vst [vmem:[#allocation3 + $0x18] sm:$0xff] %v417
    %444 = vst [vmem:[#allocation3 + $0x20] sm:$0xff] %v422
    %445 = vst [vmem:[#allocation3 + $0x28] sm:$0xff] %v427
    %446 = vst [vmem:[#allocation3 + $0x30] sm:$0xff] %v432
    %447 = vst [vmem:[#allocation3 + $0x38] sm:$0xff] %v437
    %v448 = vld [vmem:[#allocation16] sm:$0xff]
    %v449 = vld [vmem:[#allocation16 + $0x8] sm:$0xff]
    %v450 = vld [vmem:[#allocation16 + $0x10] sm:$0xff]
    %v451 = vld [vmem:[#allocation16 + $0x18] sm:$0xff]
    %v452 = vld [vmem:[#allocation17] sm:$0xff]
    %v453 = vld [vmem:[#allocation17 + $0x8] sm:$0xff]
    %v454 = vld [vmem:[#allocation17 + $0x10] sm:$0xff]
    %v455 = vld [vmem:[#allocation17 + $0x18] sm:$0xff]
    %v456 = vld [vmem:[%s0] sm:$0xff]
    %s457 = smul.u32 0, 8
    %s458 = ssub.s32 0, 0
    %s459 = smul.u32 %s458, 8
    %v460 = vld [vmem:[#allocation4] sm:$0xff]
    %v461 = vld [vmem:[#allocation5] sm:$0xff]
    %v462 = vld [vmem:[#allocation6] sm:$0xff]
    %v463 = vld [vmem:[#allocation7] sm:$0xff]
    loop: start=0, step=1, limit=4
    $region66: #{tpu_custom_call.1} parent=1 // loop_pre_header
      _
    $region67: #{tpu_custom_call.1} parent=1 // loop_header
      %s465 = sphi 0, %s469
      %p466 = scmp.ge.s32.totalorder %s465, 4
      %v470 = vphi %v460, %v966
      %v471 = vphi %v461, %v970
      %v472 = vphi %v462, %v974
      %v473 = vphi %v463, %v978
    $region68: #{tpu_custom_call.1} parent=1 // loop_header_branch
      %468 = sbr.rel (%p466) target = $region72
    $region69: #{tpu_custom_call.1} parent=1 // loop_body
      %s474 = smul.u32 %s465, 2
      %s475 = sadd.s32 %s474, 1
      %s476 = ssub.s32 7, %s474
      %s477 = sadd.s32 %s457, %s474
      %v478 = vstv %s477
      %vm479 = vcmp.lt.s32.totalorder %v478, %v456
      %s480 = sadd.s32 %s459, %s476
      %v481 = vstv %s480
      %vm482 = vcmp.lt.s32.totalorder %v481, %v456
      %s483 = smul.u32 %s474, 8
      %s484 = scalar_lea.vmem [#allocation2], %s483
      %v485 = vld [vmem:[%s484] sm:$0xff]
      %v487 = vsel %vm166, %v470, 0
      %489 = vmatprep.subr.mxu0 0.0
      %490 = vmatpush1.msra.mxu0 %v448
      %491 = vmatprep.subr.mxu0 0.0
      %492 = vmatpush1.msra.mxu0 %v449
      %493 = vmatprep.subr.mxu0 0.0
      %494 = vmatpush1.msra.mxu0 %v450
      %495 = vmatprep.subr.mxu0 0.0
      %496 = vmatpush1.msra.mxu0 %v451
      %497 = vmatprep.subr.mxu0 0.0
      %498 = vmatpush1.msra.mxu0 0.0
      %499 = vmatprep.subr.mxu0 0.0
      %500 = vmatpush1.msra.mxu0 0.0
      %501 = vmatprep.subr.mxu0 0.0
      %502 = vmatpush1.msra.mxu0 0.0
      %503 = vmatprep.subr.mxu0 0.0
      %504 = vmatpush1.msra.mxu0 0.0
      %505 = vmatprep.subr.mxu0 0.0
      %506 = vmatpush1.msra.mxu0 0.0
      %507 = vmatprep.subr.mxu0 0.0
      %508 = vmatpush1.msra.mxu0 0.0
      %509 = vmatprep.subr.mxu0 0.0
      %510 = vmatpush1.msra.mxu0 0.0
      %511 = vmatprep.subr.mxu0 0.0
      %512 = vmatpush1.msra.mxu0 0.0
      %513 = vmatprep.subr.mxu0 0.0
      %514 = vmatpush1.msra.mxu0 0.0
      %515 = vmatprep.subr.mxu0 0.0
      %516 = vmatpush1.msra.mxu0 0.0
      %517 = vmatprep.subr.mxu0 0.0
      %518 = vmatpush1.msra.mxu0 0.0
      %519 = vmatprep.subr.mxu0 0.0
      %520 = vmatpush1.msra.mxu0 0.0
      %521 = vmatprep.subr.mxu0 0.0
      %522 = vmatpush1.msra.mxu0 0.0
      %523 = vmatprep.subr.mxu0 0.0
      %524 = vmatpush1.msra.mxu0 0.0
      %525 = vmatprep.subr.mxu0 0.0
      %526 = vmatpush1.msra.mxu0 0.0
      %527 = vmatprep.subr.mxu0 0.0
      %528 = vmatpush1.msra.mxu0 0.0
      %529 = vmatprep.subr.mxu0 0.0
      %530 = vmatpush1.msra.mxu0 0.0
      %531 = vmatprep.subr.mxu0 0.0
      %532 = vmatpush1.msra.mxu0 0.0
      %533 = vmatprep.subr.mxu0 0.0
      %534 = vmatpush1.msra.mxu0 0.0
      %535 = vmatprep.subr.mxu0 0.0
      %536 = vmatpush1.msra.mxu0 0.0
      %537 = vmatprep.subr.mxu0 0.0
      %538 = vmatpush1.msra.mxu0 0.0
      %539 = vmatprep.subr.mxu0 0.0
      %540 = vmatpush1.msra.mxu0 0.0
      %541 = vmatprep.subr.mxu0 0.0
      %542 = vmatpush1.msra.mxu0 0.0
      %543 = vmatprep.subr.mxu0 0.0
      %544 = vmatpush1.msra.mxu0 0.0
      %545 = vmatprep.subr.mxu0 0.0
      %546 = vmatpush1.msra.mxu0 0.0
      %547 = vmatprep.subr.mxu0 0.0
      %548 = vmatpush1.msra.mxu0 0.0
      %549 = vmatprep.subr.mxu0 0.0
      %550 = vmatpush1.msra.mxu0 0.0
      %551 = vmatprep.subr.mxu0 0.0
      %552 = vmatpush1.msra.mxu0 0.0
      %553 = vmatprep.mubr.f32.mxu0 0.0
      %554 = vmatmul.mubr.f32.gmra.mrb[0].mxu0 %v487
      %v555 = vpop.f32.mrb[0].mxu0
      %v556 = vadd.f32 %v485, %v555
      %v557 = vpop.f32.mrb[0].mxu0
      %558 = vdwg.mxu0
      %v559 = vxor.u32 %v556, 2147483648
      %v560 = vmul.f32 %v559, 1.442695
      %v561 = vpow.pop %v560
      %v562 = vadd.f32 %v561, 1.0
      %v563 = vrcp.pop %v562
      %v564 = vmul.f32 1.0, %v563
      %v565 = vtanh.pop %v556
      %567 = vrot.lane.b32.xlu0 %v471, 32
      %v568 = vpop.permute.xlu0 %567
      %v570 = vmul.f32 %v564, %v568
      %572 = vrot.lane.b32.xlu0 %v565, 64
      %v573 = vpop.permute.xlu0 %572
      %v575 = vmul.f32 %v564, %v573
      %577 = vrot.lane.b32.xlu0 %v575, 32
      %v578 = vpop.permute.xlu0 %577
      %v580 = vadd.f32 %v570, %v578
      %v581 = vtanh.pop %v580
      %583 = vrot.lane.b32.xlu0 %v581, 64
      %v584 = vpop.permute.xlu0 %583
      %v586 = vmul.f32 %v564, %v584
      %s587 = smul.u32 %s476, 8
      %s588 = scalar_lea.vmem [#allocation3], %s587
      %v589 = vld [vmem:[%s588] sm:$0xff]
      %v591 = vsel %vm166, %v472, 0
      %593 = vmatprep.subr.mxu0 0.0
      %594 = vmatpush1.msra.mxu0 %v452
      %595 = vmatprep.subr.mxu0 0.0
      %596 = vmatpush1.msra.mxu0 %v453
      %597 = vmatprep.subr.mxu0 0.0
      %598 = vmatpush1.msra.mxu0 %v454
      %599 = vmatprep.subr.mxu0 0.0
      %600 = vmatpush1.msra.mxu0 %v455
      %601 = vmatprep.subr.mxu0 0.0
      %602 = vmatpush1.msra.mxu0 0.0
      %603 = vmatprep.subr.mxu0 0.0
      %604 = vmatpush1.msra.mxu0 0.0
      %605 = vmatprep.subr.mxu0 0.0
      %606 = vmatpush1.msra.mxu0 0.0
      %607 = vmatprep.subr.mxu0 0.0
      %608 = vmatpush1.msra.mxu0 0.0
      %609 = vmatprep.subr.mxu0 0.0
      %610 = vmatpush1.msra.mxu0 0.0
      %611 = vmatprep.subr.mxu0 0.0
      %612 = vmatpush1.msra.mxu0 0.0
      %613 = vmatprep.subr.mxu0 0.0
      %614 = vmatpush1.msra.mxu0 0.0
      %615 = vmatprep.subr.mxu0 0.0
      %616 = vmatpush1.msra.mxu0 0.0
      %617 = vmatprep.subr.mxu0 0.0
      %618 = vmatpush1.msra.mxu0 0.0
      %619 = vmatprep.subr.mxu0 0.0
      %620 = vmatpush1.msra.mxu0 0.0
      %621 = vmatprep.subr.mxu0 0.0
      %622 = vmatpush1.msra.mxu0 0.0
      %623 = vmatprep.subr.mxu0 0.0
      %624 = vmatpush1.msra.mxu0 0.0
      %625 = vmatprep.subr.mxu0 0.0
      %626 = vmatpush1.msra.mxu0 0.0
      %627 = vmatprep.subr.mxu0 0.0
      %628 = vmatpush1.msra.mxu0 0.0
      %629 = vmatprep.subr.mxu0 0.0
      %630 = vmatpush1.msra.mxu0 0.0
      %631 = vmatprep.subr.mxu0 0.0
      %632 = vmatpush1.msra.mxu0 0.0
      %633 = vmatprep.subr.mxu0 0.0
      %634 = vmatpush1.msra.mxu0 0.0
      %635 = vmatprep.subr.mxu0 0.0
      %636 = vmatpush1.msra.mxu0 0.0
      %637 = vmatprep.subr.mxu0 0.0
      %638 = vmatpush1.msra.mxu0 0.0
      %639 = vmatprep.subr.mxu0 0.0
      %640 = vmatpush1.msra.mxu0 0.0
      %641 = vmatprep.subr.mxu0 0.0
      %642 = vmatpush1.msra.mxu0 0.0
      %643 = vmatprep.subr.mxu0 0.0
      %644 = vmatpush1.msra.mxu0 0.0
      %645 = vmatprep.subr.mxu0 0.0
      %646 = vmatpush1.msra.mxu0 0.0
      %647 = vmatprep.subr.mxu0 0.0
      %648 = vmatpush1.msra.mxu0 0.0
      %649 = vmatprep.subr.mxu0 0.0
      %650 = vmatpush1.msra.mxu0 0.0
      %651 = vmatprep.subr.mxu0 0.0
      %652 = vmatpush1.msra.mxu0 0.0
      %653 = vmatprep.subr.mxu0 0.0
      %654 = vmatpush1.msra.mxu0 0.0
      %655 = vmatprep.subr.mxu0 0.0
      %656 = vmatpush1.msra.mxu0 0.0
      %657 = vmatprep.mubr.f32.mxu0 0.0
      %658 = vmatmul.mubr.f32.gmra.mrb[0].mxu0 %v591
      %v659 = vpop.f32.mrb[0].mxu0
      %v660 = vadd.f32 %v589, %v659
      %v661 = vpop.f32.mrb[0].mxu0
      %662 = vdwg.mxu0
      %v663 = vxor.u32 %v660, 2147483648
      %v664 = vmul.f32 %v663, 1.442695
      %v665 = vpow.pop %v664
      %v666 = vadd.f32 %v665, 1.0
      %v667 = vrcp.pop %v666
      %v668 = vmul.f32 1.0, %v667
      %v669 = vtanh.pop %v660
      %671 = vrot.lane.b32.xlu0 %v473, 32
      %v672 = vpop.permute.xlu0 %671
      %v674 = vmul.f32 %v668, %v672
      %676 = vrot.lane.b32.xlu0 %v669, 64
      %v677 = vpop.permute.xlu0 %676
      %v679 = vmul.f32 %v668, %v677
      %681 = vrot.lane.b32.xlu0 %v679, 32
      %v682 = vpop.permute.xlu0 %681
      %v684 = vadd.f32 %v674, %v682
      %v685 = vtanh.pop %v684
      %687 = vrot.lane.b32.xlu0 %v685, 64
      %v688 = vpop.permute.xlu0 %687
      %v690 = vmul.f32 %v668, %v688
      %v691 = vsel %vm479, 1, 0
      %692 = vset.pattern.permute.xlu0 0
      %693 = vperm.xlu0 %692, %v691
      %v694 = vpop.permute.xlu0 %693
      %vm695 = vcmp.eq.s32.totalorder %v694, 1
      %v696 = vsel %vm695, %v586, 0.0
      %698 = vrot.lane.b32.xlu0 %v696, 32
      %v699 = vpop.permute.xlu0 %698
      %s701 = scalar_lea.vmem [#allocation19], %s483
      %702 = vst.msk [vmem:[%s701] sm:$0xff] %vm166, %v699
      %v703 = vsel %vm482, 1, 0
      %704 = vset.pattern.permute.xlu0 0
      %705 = vperm.xlu0 %704, %v703
      %v706 = vpop.permute.xlu0 %705
      %vm707 = vcmp.eq.s32.totalorder %v706, 1
      %v708 = vsel %vm707, %v690, 0.0
      %710 = vrot.lane.b32.xlu0 %v708, 32
      %v711 = vpop.permute.xlu0 %710
      %s713 = scalar_lea.vmem [#allocation20], %s587
      %714 = vst.msk [vmem:[%s713] sm:$0xff] %vm166, %v711
      %715 = vrot.lane.b32.xlu0 %v470, 96
      %v716 = vpop.permute.xlu0 %715
      %v718 = vsel %vm695, %v586, %v716
      %v719 = vsel %vm695, %v580, %v568
      %720 = vrot.lane.b32.xlu0 %v472, 96
      %v721 = vpop.permute.xlu0 %720
      %v723 = vsel %vm707, %v690, %v721
      %v724 = vsel %vm707, %v684, %v672
      %s725 = ssub.s32 6, %s474
      %s726 = sadd.s32 %s457, %s475
      %v727 = vstv %s726
      %vm728 = vcmp.lt.s32.totalorder %v727, %v456
      %s729 = sadd.s32 %s459, %s725
      %v730 = vstv %s729
      %vm731 = vcmp.lt.s32.totalorder %v730, %v456
      %s732 = smul.u32 %s475, 8
      %s733 = scalar_lea.vmem [#allocation2], %s732
      %v734 = vld [vmem:[%s733] sm:$0xff]
      %736 = vrot.lane.b32.xlu0 %v718, 32
      %v737 = vpop.permute.xlu0 %736
      %v738 = vsel %vm166, %v737, 0
      %740 = vmatprep.subr.mxu0 0.0
      %741 = vmatpush1.msra.mxu0 %v448
      %742 = vmatprep.subr.mxu0 0.0
      %743 = vmatpush1.msra.mxu0 %v449
      %744 = vmatprep.subr.mxu0 0.0
      %745 = vmatpush1.msra.mxu0 %v450
      %746 = vmatprep.subr.mxu0 0.0
      %747 = vmatpush1.msra.mxu0 %v451
      %748 = vmatprep.subr.mxu0 0.0
      %749 = vmatpush1.msra.mxu0 0.0
      %750 = vmatprep.subr.mxu0 0.0
      %751 = vmatpush1.msra.mxu0 0.0
      %752 = vmatprep.subr.mxu0 0.0
      %753 = vmatpush1.msra.mxu0 0.0
      %754 = vmatprep.subr.mxu0 0.0
      %755 = vmatpush1.msra.mxu0 0.0
      %756 = vmatprep.subr.mxu0 0.0
      %757 = vmatpush1.msra.mxu0 0.0
      %758 = vmatprep.subr.mxu0 0.0
      %759 = vmatpush1.msra.mxu0 0.0
      %760 = vmatprep.subr.mxu0 0.0
      %761 = vmatpush1.msra.mxu0 0.0
      %762 = vmatprep.subr.mxu0 0.0
      %763 = vmatpush1.msra.mxu0 0.0
      %764 = vmatprep.subr.mxu0 0.0
      %765 = vmatpush1.msra.mxu0 0.0
      %766 = vmatprep.subr.mxu0 0.0
      %767 = vmatpush1.msra.mxu0 0.0
      %768 = vmatprep.subr.mxu0 0.0
      %769 = vmatpush1.msra.mxu0 0.0
      %770 = vmatprep.subr.mxu0 0.0
      %771 = vmatpush1.msra.mxu0 0.0
      %772 = vmatprep.subr.mxu0 0.0
      %773 = vmatpush1.msra.mxu0 0.0
      %774 = vmatprep.subr.mxu0 0.0
      %775 = vmatpush1.msra.mxu0 0.0
      %776 = vmatprep.subr.mxu0 0.0
      %777 = vmatpush1.msra.mxu0 0.0
      %778 = vmatprep.subr.mxu0 0.0
      %779 = vmatpush1.msra.mxu0 0.0
      %780 = vmatprep.subr.mxu0 0.0
      %781 = vmatpush1.msra.mxu0 0.0
      %782 = vmatprep.subr.mxu0 0.0
      %783 = vmatpush1.msra.mxu0 0.0
      %784 = vmatprep.subr.mxu0 0.0
      %785 = vmatpush1.msra.mxu0 0.0
      %786 = vmatprep.subr.mxu0 0.0
      %787 = vmatpush1.msra.mxu0 0.0
      %788 = vmatprep.subr.mxu0 0.0
      %789 = vmatpush1.msra.mxu0 0.0
      %790 = vmatprep.subr.mxu0 0.0
      %791 = vmatpush1.msra.mxu0 0.0
      %792 = vmatprep.subr.mxu0 0.0
      %793 = vmatpush1.msra.mxu0 0.0
      %794 = vmatprep.subr.mxu0 0.0
      %795 = vmatpush1.msra.mxu0 0.0
      %796 = vmatprep.subr.mxu0 0.0
      %797 = vmatpush1.msra.mxu0 0.0
      %798 = vmatprep.subr.mxu0 0.0
      %799 = vmatpush1.msra.mxu0 0.0
      %800 = vmatprep.subr.mxu0 0.0
      %801 = vmatpush1.msra.mxu0 0.0
      %802 = vmatprep.subr.mxu0 0.0
      %803 = vmatpush1.msra.mxu0 0.0
      %804 = vmatprep.mubr.f32.mxu0 0.0
      %805 = vmatmul.mubr.f32.gmra.mrb[0].mxu0 %v738
      %v806 = vpop.f32.mrb[0].mxu0
      %v807 = vadd.f32 %v734, %v806
      %v808 = vpop.f32.mrb[0].mxu0
      %809 = vdwg.mxu0
      %v810 = vxor.u32 %v807, 2147483648
      %v811 = vmul.f32 %v810, 1.442695
      %v812 = vpow.pop %v811
      %v813 = vadd.f32 %v812, 1.0
      %v814 = vrcp.pop %v813
      %v815 = vmul.f32 1.0, %v814
      %v816 = vtanh.pop %v807
      %v817 = vmul.f32 %v815, %v719
      %819 = vrot.lane.b32.xlu0 %v816, 64
      %v820 = vpop.permute.xlu0 %819
      %v822 = vmul.f32 %v815, %v820
      %824 = vrot.lane.b32.xlu0 %v822, 32
      %v825 = vpop.permute.xlu0 %824
      %v827 = vadd.f32 %v817, %v825
      %v828 = vtanh.pop %v827
      %830 = vrot.lane.b32.xlu0 %v828, 64
      %v831 = vpop.permute.xlu0 %830
      %v833 = vmul.f32 %v815, %v831
      %s834 = smul.u32 %s725, 8
      %s835 = scalar_lea.vmem [#allocation3], %s834
      %v836 = vld [vmem:[%s835] sm:$0xff]
      %838 = vrot.lane.b32.xlu0 %v723, 32
      %v839 = vpop.permute.xlu0 %838
      %v840 = vsel %vm166, %v839, 0
      %842 = vmatprep.subr.mxu0 0.0
      %843 = vmatpush1.msra.mxu0 %v452
      %844 = vmatprep.subr.mxu0 0.0
      %845 = vmatpush1.msra.mxu0 %v453
      %846 = vmatprep.subr.mxu0 0.0
      %847 = vmatpush1.msra.mxu0 %v454
      %848 = vmatprep.subr.mxu0 0.0
      %849 = vmatpush1.msra.mxu0 %v455
      %850 = vmatprep.subr.mxu0 0.0
      %851 = vmatpush1.msra.mxu0 0.0
      %852 = vmatprep.subr.mxu0 0.0
      %853 = vmatpush1.msra.mxu0 0.0
      %854 = vmatprep.subr.mxu0 0.0
      %855 = vmatpush1.msra.mxu0 0.0
      %856 = vmatprep.subr.mxu0 0.0
      %857 = vmatpush1.msra.mxu0 0.0
      %858 = vmatprep.subr.mxu0 0.0
      %859 = vmatpush1.msra.mxu0 0.0
      %860 = vmatprep.subr.mxu0 0.0
      %861 = vmatpush1.msra.mxu0 0.0
      %862 = vmatprep.subr.mxu0 0.0
      %863 = vmatpush1.msra.mxu0 0.0
      %864 = vmatprep.subr.mxu0 0.0
      %865 = vmatpush1.msra.mxu0 0.0
      %866 = vmatprep.subr.mxu0 0.0
      %867 = vmatpush1.msra.mxu0 0.0
      %868 = vmatprep.subr.mxu0 0.0
      %869 = vmatpush1.msra.mxu0 0.0
      %870 = vmatprep.subr.mxu0 0.0
      %871 = vmatpush1.msra.mxu0 0.0
      %872 = vmatprep.subr.mxu0 0.0
      %873 = vmatpush1.msra.mxu0 0.0
      %874 = vmatprep.subr.mxu0 0.0
      %875 = vmatpush1.msra.mxu0 0.0
      %876 = vmatprep.subr.mxu0 0.0
      %877 = vmatpush1.msra.mxu0 0.0
      %878 = vmatprep.subr.mxu0 0.0
      %879 = vmatpush1.msra.mxu0 0.0
      %880 = vmatprep.subr.mxu0 0.0
      %881 = vmatpush1.msra.mxu0 0.0
      %882 = vmatprep.subr.mxu0 0.0
      %883 = vmatpush1.msra.mxu0 0.0
      %884 = vmatprep.subr.mxu0 0.0
      %885 = vmatpush1.msra.mxu0 0.0
      %886 = vmatprep.subr.mxu0 0.0
      %887 = vmatpush1.msra.mxu0 0.0
      %888 = vmatprep.subr.mxu0 0.0
      %889 = vmatpush1.msra.mxu0 0.0
      %890 = vmatprep.subr.mxu0 0.0
      %891 = vmatpush1.msra.mxu0 0.0
      %892 = vmatprep.subr.mxu0 0.0
      %893 = vmatpush1.msra.mxu0 0.0
      %894 = vmatprep.subr.mxu0 0.0
      %895 = vmatpush1.msra.mxu0 0.0
      %896 = vmatprep.subr.mxu0 0.0
      %897 = vmatpush1.msra.mxu0 0.0
      %898 = vmatprep.subr.mxu0 0.0
      %899 = vmatpush1.msra.mxu0 0.0
      %900 = vmatprep.subr.mxu0 0.0
      %901 = vmatpush1.msra.mxu0 0.0
      %902 = vmatprep.subr.mxu0 0.0
      %903 = vmatpush1.msra.mxu0 0.0
      %904 = vmatprep.subr.mxu0 0.0
      %905 = vmatpush1.msra.mxu0 0.0
      %906 = vmatprep.mubr.f32.mxu0 0.0
      %907 = vmatmul.mubr.f32.gmra.mrb[0].mxu0 %v840
      %v908 = vpop.f32.mrb[0].mxu0
      %v909 = vadd.f32 %v836, %v908
      %v910 = vpop.f32.mrb[0].mxu0
      %911 = vdwg.mxu0
      %v912 = vxor.u32 %v909, 2147483648
      %v913 = vmul.f32 %v912, 1.442695
      %v914 = vpow.pop %v913
      %v915 = vadd.f32 %v914, 1.0
      %v916 = vrcp.pop %v915
      %v917 = vmul.f32 1.0, %v916
      %v918 = vtanh.pop %v909
      %v919 = vmul.f32 %v917, %v724
      %921 = vrot.lane.b32.xlu0 %v918, 64
      %v922 = vpop.permute.xlu0 %921
      %v924 = vmul.f32 %v917, %v922
      %926 = vrot.lane.b32.xlu0 %v924, 32
      %v927 = vpop.permute.xlu0 %926
      %v929 = vadd.f32 %v919, %v927
      %v930 = vtanh.pop %v929
      %932 = vrot.lane.b32.xlu0 %v930, 64
      %v933 = vpop.permute.xlu0 %932
      %v935 = vmul.f32 %v917, %v933
      %v936 = vsel %vm728, 1, 0
      %937 = vset.pattern.permute.xlu0 0
      %938 = vperm.xlu0 %937, %v936
      %v939 = vpop.permute.xlu0 %938
      %vm940 = vcmp.eq.s32.totalorder %v939, 1
      %v941 = vsel %vm940, %v833, 0.0
      %943 = vrot.lane.b32.xlu0 %v941, 32
      %v944 = vpop.permute.xlu0 %943
      %s946 = scalar_lea.vmem [#allocation19], %s732
      %947 = vst.msk [vmem:[%s946] sm:$0xff] %vm166, %v944
      %v948 = vsel %vm731, 1, 0
      %949 = vset.pattern.permute.xlu0 0
      %950 = vperm.xlu0 %949, %v948
      %v951 = vpop.permute.xlu0 %950
      %vm952 = vcmp.eq.s32.totalorder %v951, 1
      %v953 = vsel %vm952, %v935, 0.0
      %955 = vrot.lane.b32.xlu0 %v953, 32
      %v956 = vpop.permute.xlu0 %955
      %s958 = scalar_lea.vmem [#allocation20], %s834
      %959 = vst.msk [vmem:[%s958] sm:$0xff] %vm166, %v956
      %v960 = vsel %vm940, %v833, %v718
      %v961 = vsel %vm940, %v827, %v719
      %v962 = vsel %vm952, %v935, %v723
      %v963 = vsel %vm952, %v929, %v724
      %965 = vrot.lane.b32.xlu0 %v960, 32
      %v966 = vpop.permute.xlu0 %965
      %969 = vrot.lane.b32.xlu0 %v961, 96
      %v970 = vpop.permute.xlu0 %969
      %973 = vrot.lane.b32.xlu0 %v962, 32
      %v974 = vpop.permute.xlu0 %973
      %977 = vrot.lane.b32.xlu0 %v963, 96
      %v978 = vpop.permute.xlu0 %977
    $region70: #{tpu_custom_call.1} parent=1 // loop_footer
      %s469 = sadd.s32 1, %s465
    $region71: #{tpu_custom_call.1} parent=1 // loop_footer_branch
      %464 = sbr.rel target = $region67
    $region72: #{tpu_custom_call.1} parent=1 // loop_exit
      _
    %980 = vst.msk [vmem:[#allocation4] sm:$0xff] %vm166, %v470
    %981 = vst.msk [vmem:[#allocation5] sm:$0xff] %vm166, %v471
    %982 = vst.msk [vmem:[#allocation6] sm:$0xff] %vm166, %v472
    %983 = vst.msk [vmem:[#allocation7] sm:$0xff] %vm166, %v473
    // Predicated region
    $region73: #{tpu_custom_call.1} parent=1 // pred_check
      _
    $region74: #{tpu_custom_call.1} parent=1 // pred_check_branch
      %985 = sbr.rel (0) target = $region76
    $region75: #{tpu_custom_call.1} parent=1 // pred_region
      %s987 = ssub.s32 1024, 1024
      %988 = vsyncadd [#allocation10], %s987
      %s989 = sshll.u32 [#allocation19], 4
      %s990 = int_to_ptr.vmem [resolvable:$true] %s989
      %995 = dma.vmem_to_hbm [thread:$0]  %s990, 1024, %s9, [#allocation10], 128, 128, 8
    $region76: #{tpu_custom_call.1} parent=1 // pred_fallthru
      _
    // Predicated region
    $region77: #{tpu_custom_call.1} parent=1 // pred_check
      _
    $region78: #{tpu_custom_call.1} parent=1 // pred_check_branch
      %997 = sbr.rel (0) target = $region80
    $region79: #{tpu_custom_call.1} parent=1 // pred_region
      %s998 = ssub.s32 0, 0
      %s999 = smul.u32 8, %s998
      %s1001 = ssub.s32 1024, 1024
      %1002 = vsyncadd [#allocation21], %s1001
      %s1003 = smul.addr %s999, 128
      %s1004 = scalar_lea.hbm %s10, %s1003
      %s1005 = sshll.u32 [#allocation20], 4
      %s1006 = int_to_ptr.vmem [resolvable:$true] %s1005
      %1011 = dma.vmem_to_hbm [thread:$0]  %s1006, 1024, %s1004, [#allocation21], 128, 128, 8
    $region80: #{tpu_custom_call.1} parent=1 // pred_fallthru
      _
    // Predicated region
    $region81: #{tpu_custom_call.1} parent=1 // pred_check
      _
    $region82: #{tpu_custom_call.1} parent=1 // pred_check_branch
      %1013 = sbr.rel (0) target = $region84
    $region83: #{tpu_custom_call.1} parent=1 // pred_region
      %1014 = dma.done [#allocation10], 1024
    $region84: #{tpu_custom_call.1} parent=1 // pred_fallthru
      _
    // Predicated region
    $region85: #{tpu_custom_call.1} parent=1 // pred_check
      _
    $region86: #{tpu_custom_call.1} parent=1 // pred_check_branch
      %1016 = sbr.rel (0) target = $region88
    $region87: #{tpu_custom_call.1} parent=1 // pred_region
      %1017 = dma.done [#allocation21], 1024
    $region88: #{tpu_custom_call.1} parent=1 // pred_fallthru
      _
    %1018 = vsyncpa [#allocation9], 1
    %1019 = vsyncpa [#allocation12], 1
    %1020 = vsyncpa [#allocation15], 1
    %1021 = vsyncpa [#allocation18], 1
    %1022 = vsyncpa [#allocation10], 1
    %1023 = vsyncpa [#allocation21], 1

</llo_original>
